<compile_context>
chip_gen: v7x
topology: tpu7x:2x2x1
jax: 0.10.0
libtpu: 0.0.40
codegen_flags: <defaults>
</compile_context>

<pallas_src>
import functools
import math

import jax
import jax.numpy as jnp
from jax.experimental import pallas as pl
from jax.experimental.pallas import tpu as pltpu


# ---------------------------------------------------------------------------
# Fused kernel: gather + PE + cross queries + both masked attentions + concat.
# Processes one batch tile (TB rows) per grid step.
# ---------------------------------------------------------------------------
def _encoder_kernel(ls, x_ref, idx_ref, len_ref, pe_ref, out_ref):
    f32 = jnp.float32
    x = x_ref[...]                                   # (TB, S, D) native dtype (no upcast)
    TB, S, D = x.shape
    L = idx_ref.shape[1]                             # Ls + Lb

    # --- Fused row gather (stack + buffer) as ONE one-hot matmul on the MXU,
    #     then add the pre-concatenated PE table. -----------------------------
    idx = idx_ref[...]                               # (TB, L) int32
    onehot = (
        jax.lax.broadcasted_iota(jnp.int32, (TB, L, S), 2) == idx[:, :, None]
    ).astype(x.dtype)                                # (TB, L, S)
    keys = jnp.einsum("bls,bsd->bld", onehot, x,
                      preferred_element_type=f32)    # (TB, L, D) f32 accum
    keys = keys + pe_ref[...].astype(f32)[None, :, :]

    # --- Cross queries (q=2): stack query = buffer_keys[:,0] = keys[:,ls],
    #     buffer query = stack_keys[:,0] = keys[:,0]. -------------------------
    q = jnp.concatenate([keys[:, ls:ls + 1, :], keys[:, 0:1, :]], axis=1)  # (TB,2,D)

    # --- Both masked attentions fused into one energies/softmax/context pass
    #     with a block-diagonal + sequence-length mask. -----------------------
    e = jnp.einsum("bqd,bld->bql", q, keys, preferred_element_type=f32)    # (TB,2,L)
    lens = len_ref[...]                              # (TB, 2): [stack_len, buffer_len]
    slen = lens[:, 0][:, None, None]                 # (TB,1,1)
    blen = lens[:, 1][:, None, None]                 # (TB,1,1)
    pos = jax.lax.broadcasted_iota(jnp.int32, (TB, 2, L), 2)
    qid = jax.lax.broadcasted_iota(jnp.int32, (TB, 2, L), 1)
    stack_ok = (qid == 0) & (pos < jnp.minimum(slen, ls))     # stack rows [0, Ls)
    buf_ok = (qid == 1) & (pos >= ls) & (pos < ls + blen)     # buffer rows [Ls, Ls+Lb)
    mask = stack_ok | buf_ok
    e = jnp.where(mask, e, -1e30)
    m = jnp.max(e, axis=-1, keepdims=True)
    p = jnp.where(mask, jnp.exp(e - m), 0.0)
    # Guard against fully-masked (length==0) rows -> zero context, no NaN.
    denom = jnp.maximum(jnp.sum(p, axis=-1, keepdims=True), 1e-30)
    w = p * pl.reciprocal(denom, approx=True)        # EUP vrcp (free slot)
    ctx = jnp.einsum("bql,bld->bqd", w, keys, preferred_element_type=f32)  # (TB,2,D)

    # --- Single full-width store of the concatenated output ------------------
    out_ref[...] = jnp.concatenate([ctx[:, 0, :], ctx[:, 1, :]],
                                   axis=-1).astype(out_ref.dtype)


# ---------------------------------------------------------------------------
# Wrapper
# ---------------------------------------------------------------------------
def sinusoidal_positional_encoding(max_len, model_size):
    # Same as the reference PositionalEmbeddings (even model_size assumed).
    pos = jnp.arange(max_len, dtype=jnp.float32)[:, None]
    div = jnp.exp(
        jnp.arange(0, model_size, 2, dtype=jnp.float32)
        * -(math.log(10000.0) / model_size)
    )
    pe = jnp.zeros((max_len, model_size), dtype=jnp.float32)
    pe = pe.at[:, 0::2].set(jnp.sin(pos * div))
    pe = pe.at[:, 1::2].set(jnp.cos(pos * div))
    return pe


def stack_buffer_query_configuration_encoder(
    contextualized_input_batch,  # (B, S, D) float
    stacks,                      # (B, Ls) int token indices
    buffers,                     # (B, Lb) int token indices
    stack_lengths,               # (B,) int
    buffer_lengths,              # (B,) int
    *,
    batch_tile: int = 8,         # tuning knob: keep a multiple of 8 (sublanes);
                                 # raise to 16-32 at large B on v5e/v6e, keep
                                 # roughly half of that on v7x (64 MiB VMEM).
    vmem_limit_bytes: int | None = None,
):
    B, S, D = contextualized_input_batch.shape
    Ls, Lb = stacks.shape[1], buffers.shape[1]
    L = Ls + Lb

    # Sublane-aligned batch tile; pad the batch up to a multiple of it.
    tb = max(int(batch_tile), 1)
    if tb % 8 != 0:
        tb = ((tb + 7) // 8) * 8
    b_pad = ((B + tb - 1) // tb) * tb

    x = contextualized_input_batch
    if b_pad != B:
        pad = b_pad - B
        x = jnp.pad(x, ((0, pad), (0, 0), (0, 0)))
        stacks = jnp.pad(stacks, ((0, pad), (0, 0)))
        buffers = jnp.pad(buffers, ((0, pad), (0, 0)))
        stack_lengths = jnp.pad(stack_lengths, (0, pad), constant_values=1)
        buffer_lengths = jnp.pad(buffer_lengths, (0, pad), constant_values=1)

    idx = jnp.concatenate([stacks, buffers], axis=1).astype(jnp.int32)        # (b_pad, L)
    lens = jnp.stack([stack_lengths, buffer_lengths], axis=1).astype(jnp.int32)  # (b_pad, 2)
    pe = sinusoidal_positional_encoding(max(Ls, Lb), D)                       # constant
    pe_cat = jnp.concatenate([pe[:Ls], pe[:Lb]], axis=0)                      # (L, D) constant

    grid = (b_pad // tb,)

    # VMEM budget: the double-buffered (tb,S,D) contextualized tile dominates.
    # Raise the scoped limit only when the default (16/32 MiB) would not fit;
    # cap well below v7x's 64 MiB physical VMEM.
    if vmem_limit_bytes is None:
        x_bytes = 2 * tb * S * D * contextualized_input_batch.dtype.itemsize
        need = x_bytes + 4 * tb * L * max(S, D) * 4 + (1 << 20)
        if need > (16 << 20):
            vmem_limit_bytes = min(int(need * 2), 48 << 20)

    out = pl.pallas_call(
        functools.partial(_encoder_kernel, Ls),
        out_shape=jax.ShapeDtypeStruct((b_pad, 2 * D), contextualized_input_batch.dtype),
        grid=grid,
        in_specs=[
            pl.BlockSpec((tb, S, D), lambda i: (i, 0, 0)),   # contextualized slab
            pl.BlockSpec((tb, L), lambda i: (i, 0)),         # [stack ; buffer] indices
            pl.BlockSpec((tb, 2), lambda i: (i, 0)),         # [stack_len, buffer_len]
            pl.BlockSpec((L, D), lambda i: (0, 0)),          # concatenated PE (const)
        ],
        out_specs=pl.BlockSpec((tb, 2 * D), lambda i: (i, 0)),
        compiler_params=pltpu.CompilerParams(
            # Batch tiles are independent -> shards across v7x's two TensorCores.
            dimension_semantics=("parallel",),
            vmem_limit_bytes=vmem_limit_bytes,
        ),
    )(x, idx, lens, pe_cat)
    return out[:B]


# ---------------------------------------------------------------------------
# Pure-JAX reference (self-check).
# ---------------------------------------------------------------------------
def _reference_forward(contextualized, stacks, buffers, stack_lengths, buffer_lengths):
    B, S, D = contextualized.shape
    Ls, Lb = stacks.shape[1], buffers.shape[1]
    pe = sinusoidal_positional_encoding(max(Ls, Lb), D)
    sk = jnp.take_along_axis(contextualized, stacks[..., None], axis=1) + pe[:Ls][None]
    bk = jnp.take_along_axis(contextualized, buffers[..., None], axis=1) + pe[:Lb][None]
    qs, qb = bk[:, 0, :], sk[:, 0, :]

    def att(keys, q, lengths):
        e = jnp.einsum("bld,bd->bl", keys, q)
        mask = jnp.arange(keys.shape[1])[None, :] < lengths[:, None]
        e = jnp.where(mask, e, -jnp.inf)
        w = jax.nn.softmax(e, axis=-1)
        w = jnp.where(mask, w, 0.0)
        return jnp.einsum("bl,bld->bd", w, keys)

    return jnp.concatenate(
        [att(sk, qs, stack_lengths), att(bk, qb, buffer_lengths)], axis=1
    )


if __name__ == "__main__":
    key = jax.random.PRNGKey(0)
    B, S, D = 2, 16, 32   # batch, sentence length, model_size
    Ls, Lb = 6, 8         # max stack / buffer lengths

    k1, k2, k3 = jax.random.split(key, 3)
    contextualized = jax.random.normal(k1, (B, S, D), dtype=jnp.float32)
    stacks = jax.random.randint(k2, (B, Ls), 0, S, dtype=jnp.int32)
    buffers = jax.random.randint(k3, (B, Lb), 0, S, dtype=jnp.int32)
    stack_lengths = jnp.array([3, 6], dtype=jnp.int32)
    buffer_lengths = jnp.array([8, 5], dtype=jnp.int32)

    fwd = jax.jit(stack_buffer_query_configuration_encoder)
    out = jax.block_until_ready(
        fwd(contextualized, stacks, buffers, stack_lengths, buffer_lengths)
    )
    assert out.shape == (B, 2 * D)

    ref = _reference_forward(
        contextualized, stacks, buffers, stack_lengths, buffer_lengths
    )
    err = float(jnp.max(jnp.abs(out - ref)))
    assert err < 5e-2, f"max abs err vs reference: {err}"
    print("KERNEL_OK")
</pallas_src>

<mosaic_0001>
module attributes {stable_mosaic.version = 11 : i64} {
  func.func @_encoder_kernel(%arg0: i32, %arg1: memref<8x16x32xf32, #tpu.memory_space<vmem>>, %arg2: memref<8x14xi32, #tpu.memory_space<vmem>>, %arg3: memref<8x2xi32, #tpu.memory_space<vmem>>, %arg4: memref<14x32xf32, #tpu.memory_space<vmem>>, %arg5: memref<8x64xf32, #tpu.memory_space<vmem>>) attributes {dimension_semantics = [#tpu.dimension_semantics<parallel>], iteration_bounds = array<i64: 1>, scalar_prefetch = 0 : i64, scratch_operands = 0 : i64, tpu.core_type = #tpu.core_type<tc>, window_params = [{transform_indices = @transform_0, window_bounds = array<i64: 8, 16, 32>}, {transform_indices = @transform_1, window_bounds = array<i64: 8, 14>}, {transform_indices = @transform_2, window_bounds = array<i64: 8, 2>}, {pipeline_mode = #tpu.pipeline_mode<synchronous>, transform_indices = @transform_3, window_bounds = array<i64: 14, 32>}, {transform_indices = @transform_4, window_bounds = array<i64: 8, 64>}]} {
    %c0 = arith.constant 0 : index
    %c0_0 = arith.constant 0 : index
    %c0_1 = arith.constant 0 : index
    %0 = vector.load %arg1[%c0, %c0_0, %c0_1] : memref<8x16x32xf32, #tpu.memory_space<vmem>>, vector<8x16x32xf32>
    %c0_2 = arith.constant 0 : index
    %c0_3 = arith.constant 0 : index
    %1 = vector.load %arg2[%c0_2, %c0_3] : memref<8x14xi32, #tpu.memory_space<vmem>>, vector<8x14xi32>
    %2 = tpu.iota {dimensions = array<i32: 2>} : vector<8x14x16xi32>
    %3 = vector.shape_cast %1 : vector<8x14xi32> to vector<8x14x1xi32>
    %4 = vector.broadcast %3 : vector<8x14x1xi32> to vector<8x14x16xi32>
    %5 = arith.cmpi eq, %2, %4 : vector<8x14x16xi32>
    %6 = arith.extui %5 : vector<8x14x16xi1> to vector<8x14x16xi32>
    %7 = arith.sitofp %6 : vector<8x14x16xi32> to vector<8x14x16xf32>
    "tpu.trace_start"() <{level = 10 : i32, message = "bls,bsd->bld"}> : () -> ()
    %cst = arith.constant dense<0.000000e+00> : vector<8x14x32xf32>
    %8 = tpu.matmul %7, %0, %cst {dimension_numbers = #tpu.dot_dimension_numbers<[2], [1], [1], [2], [0, 0, 0, 1, 1, 2], [0], [0]>} : vector<8x14x16xf32>, vector<8x16x32xf32>, vector<8x14x32xf32> -> vector<8x14x32xf32>
    "tpu.trace_stop"() : () -> ()
    %c0_4 = arith.constant 0 : index
    %c0_5 = arith.constant 0 : index
    %9 = vector.load %arg4[%c0_4, %c0_5] : memref<14x32xf32, #tpu.memory_space<vmem>>, vector<14x32xf32>
    %10 = vector.shape_cast %9 : vector<14x32xf32> to vector<1x14x32xf32>
    %11 = vector.broadcast %10 : vector<1x14x32xf32> to vector<8x14x32xf32>
    %12 = arith.addf %8, %11 : vector<8x14x32xf32>
    %13 = vector.extract_strided_slice %12 {offsets = [0, 6, 0], sizes = [8, 1, 32], strides = [1, 1, 1]} : vector<8x14x32xf32> to vector<8x1x32xf32>
    %14 = vector.extract_strided_slice %12 {offsets = [0, 0, 0], sizes = [8, 1, 32], strides = [1, 1, 1]} : vector<8x14x32xf32> to vector<8x1x32xf32>
    %15 = tpu.concatenate %13, %14 in 1 : vector<8x1x32xf32>, vector<8x1x32xf32> -> vector<8x2x32xf32>
    "tpu.trace_start"() <{level = 10 : i32, message = "bqd,bld->bql"}> : () -> ()
    %cst_6 = arith.constant dense<0.000000e+00> : vector<8x2x14xf32>
    %16 = tpu.matmul %15, %12, %cst_6 {dimension_numbers = #tpu.dot_dimension_numbers<[2], [2], [1], [1], [0, 0, 0, 1, 1, 1], [0], [0]>} : vector<8x2x32xf32>, vector<8x14x32xf32>, vector<8x2x14xf32> -> vector<8x2x14xf32>
    "tpu.trace_stop"() : () -> ()
    %c0_7 = arith.constant 0 : index
    %c0_8 = arith.constant 0 : index
    %17 = vector.load %arg3[%c0_7, %c0_8] : memref<8x2xi32, #tpu.memory_space<vmem>>, vector<8x2xi32>
    %18 = vector.extract_strided_slice %17 {offsets = [0, 0], sizes = [8, 1], strides = [1, 1]} : vector<8x2xi32> to vector<8x1xi32>
    %19 = vector.shape_cast %18 : vector<8x1xi32> to vector<8xi32>
    %20 = vector.shape_cast %19 : vector<8xi32> to vector<8x1x1xi32>
    %21 = vector.extract_strided_slice %17 {offsets = [0, 1], sizes = [8, 1], strides = [1, 1]} : vector<8x2xi32> to vector<8x1xi32>
    %22 = vector.shape_cast %21 : vector<8x1xi32> to vector<8xi32>
    %23 = vector.shape_cast %22 : vector<8xi32> to vector<8x1x1xi32>
    %24 = tpu.iota {dimensions = array<i32: 2>} : vector<8x2x14xi32>
    %25 = tpu.iota {dimensions = array<i32: 1>} : vector<8x2x14xi32>
    %c0_i32 = arith.constant 0 : i32
    %26 = vector.broadcast %c0_i32 : i32 to vector<8x2x14xi32>
    %27 = arith.cmpi eq, %25, %26 : vector<8x2x14xi32>
    %c6_i32 = arith.constant 6 : i32
    %28 = vector.broadcast %c6_i32 : i32 to vector<8x1x1xi32>
    %29 = arith.minsi %20, %28 : vector<8x1x1xi32>
    %30 = vector.broadcast %29 : vector<8x1x1xi32> to vector<8x2x14xi32>
    %31 = arith.cmpi slt, %24, %30 : vector<8x2x14xi32>
    %32 = arith.andi %27, %31 : vector<8x2x14xi1>
    %c1_i32 = arith.constant 1 : i32
    %33 = vector.broadcast %c1_i32 : i32 to vector<8x2x14xi32>
    %34 = arith.cmpi eq, %25, %33 : vector<8x2x14xi32>
    %c6_i32_9 = arith.constant 6 : i32
    %35 = vector.broadcast %c6_i32_9 : i32 to vector<8x2x14xi32>
    %36 = arith.cmpi sge, %24, %35 : vector<8x2x14xi32>
    %37 = arith.andi %34, %36 : vector<8x2x14xi1>
    %c6_i32_10 = arith.constant 6 : i32
    %38 = vector.broadcast %c6_i32_10 : i32 to vector<8x1x1xi32>
    %39 = arith.addi %38, %23 : vector<8x1x1xi32>
    %40 = vector.broadcast %39 : vector<8x1x1xi32> to vector<8x2x14xi32>
    %41 = arith.cmpi slt, %24, %40 : vector<8x2x14xi32>
    %42 = arith.andi %37, %41 : vector<8x2x14xi1>
    %43 = arith.ori %32, %42 : vector<8x2x14xi1>
    %cst_11 = arith.constant -1.000000e+30 : f32
    %44 = vector.broadcast %cst_11 : f32 to vector<8x2x14xf32>
    %45 = arith.select %43, %16, %44 : vector<8x2x14xi1>, vector<8x2x14xf32>
    %cst_12 = arith.constant dense<0xFF800000> : vector<8x2xf32>
    %46 = vector.multi_reduction <maximumf>, %45, %cst_12 [2] : vector<8x2x14xf32> to vector<8x2xf32>
    %47 = vector.shape_cast %46 : vector<8x2xf32> to vector<8x2x1xf32>
    %48 = vector.broadcast %47 : vector<8x2x1xf32> to vector<8x2x14xf32>
    %49 = arith.subf %45, %48 : vector<8x2x14xf32>
    %50 = math.exp %49 : vector<8x2x14xf32>
    %cst_13 = arith.constant 0.000000e+00 : f32
    %51 = vector.broadcast %cst_13 : f32 to vector<8x2x14xf32>
    %52 = arith.select %43, %50, %51 : vector<8x2x14xi1>, vector<8x2x14xf32>
    %cst_14 = arith.constant dense<0.000000e+00> : vector<8x2xf32>
    %53 = vector.multi_reduction <add>, %52, %cst_14 [2] : vector<8x2x14xf32> to vector<8x2xf32>
    %54 = vector.shape_cast %53 : vector<8x2xf32> to vector<8x2x1xf32>
    %cst_15 = arith.constant 1.000000e-30 : f32
    %55 = vector.broadcast %cst_15 : f32 to vector<8x2x1xf32>
    %56 = arith.maximumf %54, %55 : vector<8x2x1xf32>
    %57 = tpu.reciprocal %56 {approx = true} : vector<8x2x1xf32> -> vector<8x2x1xf32>
    %58 = vector.broadcast %57 : vector<8x2x1xf32> to vector<8x2x14xf32>
    %59 = arith.mulf %52, %58 : vector<8x2x14xf32>
    "tpu.trace_start"() <{level = 10 : i32, message = "bql,bld->bqd"}> : () -> ()
    %cst_16 = arith.constant dense<0.000000e+00> : vector<8x2x32xf32>
    %60 = tpu.matmul %59, %12, %cst_16 {dimension_numbers = #tpu.dot_dimension_numbers<[2], [1], [1], [2], [0, 0, 0, 1, 1, 2], [0], [0]>} : vector<8x2x14xf32>, vector<8x14x32xf32>, vector<8x2x32xf32> -> vector<8x2x32xf32>
    "tpu.trace_stop"() : () -> ()
    %61 = vector.extract_strided_slice %60 {offsets = [0, 0, 0], sizes = [8, 1, 32], strides = [1, 1, 1]} : vector<8x2x32xf32> to vector<8x1x32xf32>
    %62 = vector.shape_cast %61 : vector<8x1x32xf32> to vector<8x32xf32>
    %63 = vector.extract_strided_slice %60 {offsets = [0, 1, 0], sizes = [8, 1, 32], strides = [1, 1, 1]} : vector<8x2x32xf32> to vector<8x1x32xf32>
    %64 = vector.shape_cast %63 : vector<8x1x32xf32> to vector<8x32xf32>
    %65 = tpu.concatenate %62, %64 in 1 : vector<8x32xf32>, vector<8x32xf32> -> vector<8x64xf32>
    %c0_17 = arith.constant 0 : index
    %c0_18 = arith.constant 0 : index
    %66 = vector.load %arg5[%c0_17, %c0_18] : memref<8x64xf32, #tpu.memory_space<vmem>>, vector<8x64xf32>
    tpu.vector_store %arg5[%c0_17, %c0_18], %65 {strides = array<i32>} : memref<8x64xf32, #tpu.memory_space<vmem>>, vector<8x64xf32>,
    return
  }
  func.func @transform_0(%arg0: i32) -> (i32, i32, i32) {
    %c0_i32 = arith.constant 0 : i32
    %c0_i32_0 = arith.constant 0 : i32
    %c0_i32_1 = arith.constant 0 : i32
    return %arg0, %c0_i32, %c0_i32_0 : i32, i32, i32
  }
  func.func @transform_1(%arg0: i32) -> (i32, i32) {
    %c0_i32 = arith.constant 0 : i32
    %c0_i32_0 = arith.constant 0 : i32
    return %arg0, %c0_i32 : i32, i32
  }
  func.func @transform_2(%arg0: i32) -> (i32, i32) {
    %c0_i32 = arith.constant 0 : i32
    %c0_i32_0 = arith.constant 0 : i32
    return %arg0, %c0_i32 : i32, i32
  }
  func.func @transform_3(%arg0: i32) -> (i32, i32) {
    %c0_i32 = arith.constant 0 : i32
    %c0_i32_0 = arith.constant 0 : i32
    %c0_i32_1 = arith.constant 0 : i32
    return %c0_i32, %c0_i32_0 : i32, i32
  }
  func.func @transform_4(%arg0: i32) -> (i32, i32) {
    %c0_i32 = arith.constant 0 : i32
    %c0_i32_0 = arith.constant 0 : i32
    return %arg0, %c0_i32 : i32, i32
  }
}

</mosaic_0001>

<llo_original>
// kernel: stack_buffer_query_configuration_encoder.1
$region0: #{stack_buffer_query_configuration_encoder.1}
  #allocation0 [shape = 'u32[]', space=smem, size = 0x4, offset = 0x4, fixed_abs, tag = 'smem constant byte address 0x4 - core index']
  #allocation1 [shape = 'u32[144,128]{1,0:T(1,128)}', space=vmem, size = 0x12000, scoped, tag = 'internal scratch']
  %s0 = inlined_call_operand.vmem [shape: f32[8,16,32], index: 0, kind: input, shape index: {}]
  %s1 = inlined_call_operand.vmem [shape: s32[8,14], index: 1, kind: input, shape index: {}]
  %s2 = inlined_call_operand.vmem [shape: s32[8,2], index: 2, kind: input, shape index: {}]
  %s3 = inlined_call_operand.vmem [shape: f32[14,32], index: 3, kind: input, shape index: {}]
  %s4 = inlined_call_operand.vmem [shape: f32[8,64], index: 4, kind: output, shape index: {}]
  %s5 = sld [smem:[#allocation0]]
  $region26: #{stack_buffer_query_configuration_encoder.1} parent=0
    _
  %s7 = ssub.s32 1, %s5
  %s8 = scalar_select 0, %s7, %s5
  // Predicated region
  $region2: #{stack_buffer_query_configuration_encoder.1} parent=0 // pred_check
    _
  $region3: #{stack_buffer_query_configuration_encoder.1} parent=0 // pred_check_branch
    %10 = sbr.rel (0) target = $region5
  $region4: #{stack_buffer_query_configuration_encoder.1} parent=0 // pred_region
    _
  $region5: #{stack_buffer_query_configuration_encoder.1} parent=0 // pred_fallthru
    _
  // Predicated region
  $region6: #{stack_buffer_query_configuration_encoder.1} parent=0 // pred_check
    _
  $region7: #{stack_buffer_query_configuration_encoder.1} parent=0 // pred_check_branch
    %12 = sbr.rel (0) target = $region9
  $region8: #{stack_buffer_query_configuration_encoder.1} parent=0 // pred_region
    _
  $region9: #{stack_buffer_query_configuration_encoder.1} parent=0 // pred_fallthru
    _
  // Predicated region
  $region10: #{stack_buffer_query_configuration_encoder.1} parent=0 // pred_check
    _
  $region11: #{stack_buffer_query_configuration_encoder.1} parent=0 // pred_check_branch
    %14 = sbr.rel (0) target = $region13
  $region12: #{stack_buffer_query_configuration_encoder.1} parent=0 // pred_region
    _
  $region13: #{stack_buffer_query_configuration_encoder.1} parent=0 // pred_fallthru
    _
  // Predicated region
  $region14: #{stack_buffer_query_configuration_encoder.1} parent=0 // pred_check
    _
  $region15: #{stack_buffer_query_configuration_encoder.1} parent=0 // pred_check_branch
    %16 = sbr.rel (0) target = $region17
  $region16: #{stack_buffer_query_configuration_encoder.1} parent=0 // pred_region
    _
  $region17: #{stack_buffer_query_configuration_encoder.1} parent=0 // pred_fallthru
    _
  %v17 = vld [vmem:[%s0] sm:$0xff]
  %v18 = vld [vmem:[%s0 + $0x8] sm:$0xff]
  %v19 = vld [vmem:[%s0 + $0x10] sm:$0xff]
  %v20 = vld [vmem:[%s0 + $0x18] sm:$0xff]
  %v21 = vld [vmem:[%s0 + $0x20] sm:$0xff]
  %v22 = vld [vmem:[%s0 + $0x28] sm:$0xff]
  %v23 = vld [vmem:[%s0 + $0x30] sm:$0xff]
  %v24 = vld [vmem:[%s0 + $0x38] sm:$0xff]
  %v25 = vld [vmem:[%s0 + $0x40] sm:$0xff]
  %v26 = vld [vmem:[%s0 + $0x48] sm:$0xff]
  %v27 = vld [vmem:[%s0 + $0x50] sm:$0xff]
  %v28 = vld [vmem:[%s0 + $0x58] sm:$0xff]
  %v29 = vld [vmem:[%s0 + $0x60] sm:$0xff]
  %v30 = vld [vmem:[%s0 + $0x68] sm:$0xff]
  %v31 = vld [vmem:[%s0 + $0x70] sm:$0xff]
  %v32 = vld [vmem:[%s0 + $0x78] sm:$0xff]
  %v33 = vld [vmem:[%s1] sm:$0xff]
  %v34 = vlaneseq
  %v35 = vand.u32 %v34, 127
  %v36 = vlaneseq
  %v37 = vshrl.u32 %v36, 7
  %v38 = vsub.s32 0, %v37
  %v39 = vrot.slane %v33, %v38
  %41 = vbcast.lane.b32.xlu0 %v39, 256
  %v42 = vpop.permute.xlu0 %41
  %s44 = sor.u32 256, 8
  %45 = vbcast.lane.b32.xlu0 %v39, %s44
  %v46 = vpop.permute.xlu0 %45
  %v47 = vlaneseq
  %v48 = vshrl.u32 %v47, 7
  %v49 = vsub.s32 1, %v48
  %v50 = vrot.slane %v33, %v49
  %52 = vbcast.lane.b32.xlu0 %v50, 256
  %v53 = vpop.permute.xlu0 %52
  %s55 = sor.u32 256, 8
  %56 = vbcast.lane.b32.xlu0 %v50, %s55
  %v57 = vpop.permute.xlu0 %56
  %v58 = vlaneseq
  %v59 = vshrl.u32 %v58, 7
  %v60 = vsub.s32 2, %v59
  %v61 = vrot.slane %v33, %v60
  %63 = vbcast.lane.b32.xlu0 %v61, 256
  %v64 = vpop.permute.xlu0 %63
  %s66 = sor.u32 256, 8
  %67 = vbcast.lane.b32.xlu0 %v61, %s66
  %v68 = vpop.permute.xlu0 %67
  %v69 = vlaneseq
  %v70 = vshrl.u32 %v69, 7
  %v71 = vsub.s32 3, %v70
  %v72 = vrot.slane %v33, %v71
  %74 = vbcast.lane.b32.xlu0 %v72, 256
  %v75 = vpop.permute.xlu0 %74
  %s77 = sor.u32 256, 8
  %78 = vbcast.lane.b32.xlu0 %v72, %s77
  %v79 = vpop.permute.xlu0 %78
  %v80 = vlaneseq
  %v81 = vshrl.u32 %v80, 7
  %v82 = vsub.s32 4, %v81
  %v83 = vrot.slane %v33, %v82
  %85 = vbcast.lane.b32.xlu0 %v83, 256
  %v86 = vpop.permute.xlu0 %85
  %s88 = sor.u32 256, 8
  %89 = vbcast.lane.b32.xlu0 %v83, %s88
  %v90 = vpop.permute.xlu0 %89
  %v91 = vlaneseq
  %v92 = vshrl.u32 %v91, 7
  %v93 = vsub.s32 5, %v92
  %v94 = vrot.slane %v33, %v93
  %96 = vbcast.lane.b32.xlu0 %v94, 256
  %v97 = vpop.permute.xlu0 %96
  %s99 = sor.u32 256, 8
  %100 = vbcast.lane.b32.xlu0 %v94, %s99
  %v101 = vpop.permute.xlu0 %100
  %v102 = vlaneseq
  %v103 = vshrl.u32 %v102, 7
  %v104 = vsub.s32 6, %v103
  %v105 = vrot.slane %v33, %v104
  %107 = vbcast.lane.b32.xlu0 %v105, 256
  %v108 = vpop.permute.xlu0 %107
  %s110 = sor.u32 256, 8
  %111 = vbcast.lane.b32.xlu0 %v105, %s110
  %v112 = vpop.permute.xlu0 %111
  %v113 = vlaneseq
  %v114 = vshrl.u32 %v113, 7
  %v115 = vsub.s32 7, %v114
  %v116 = vrot.slane %v33, %v115
  %118 = vbcast.lane.b32.xlu0 %v116, 256
  %v119 = vpop.permute.xlu0 %118
  %s121 = sor.u32 256, 8
  %122 = vbcast.lane.b32.xlu0 %v116, %s121
  %v123 = vpop.permute.xlu0 %122
  %vm124 = vcmp.eq.s32.totalorder %v35, %v42
  %vm125 = vcmp.eq.s32.totalorder %v35, %v46
  %vm126 = vcmp.eq.s32.totalorder %v35, %v53
  %vm127 = vcmp.eq.s32.totalorder %v35, %v57
  %vm128 = vcmp.eq.s32.totalorder %v35, %v64
  %vm129 = vcmp.eq.s32.totalorder %v35, %v68
  %vm130 = vcmp.eq.s32.totalorder %v35, %v75
  %vm131 = vcmp.eq.s32.totalorder %v35, %v79
  %vm132 = vcmp.eq.s32.totalorder %v35, %v86
  %vm133 = vcmp.eq.s32.totalorder %v35, %v90
  %vm134 = vcmp.eq.s32.totalorder %v35, %v97
  %vm135 = vcmp.eq.s32.totalorder %v35, %v101
  %vm136 = vcmp.eq.s32.totalorder %v35, %v108
  %vm137 = vcmp.eq.s32.totalorder %v35, %v112
  %vm138 = vcmp.eq.s32.totalorder %v35, %v119
  %vm139 = vcmp.eq.s32.totalorder %v35, %v123
  %v140 = vsel %vm124, 1, 0
  %v141 = vsel %vm125, 1, 0
  %v142 = vsel %vm126, 1, 0
  %v143 = vsel %vm127, 1, 0
  %v144 = vsel %vm128, 1, 0
  %v145 = vsel %vm129, 1, 0
  %v146 = vsel %vm130, 1, 0
  %v147 = vsel %vm131, 1, 0
  %v148 = vsel %vm132, 1, 0
  %v149 = vsel %vm133, 1, 0
  %v150 = vsel %vm134, 1, 0
  %v151 = vsel %vm135, 1, 0
  %v152 = vsel %vm136, 1, 0
  %v153 = vsel %vm137, 1, 0
  %v154 = vsel %vm138, 1, 0
  %v155 = vsel %vm139, 1, 0
  %v156 = vcvt.s32.f32 %v140
  %v157 = vcvt.s32.f32 %v141
  %v158 = vcvt.s32.f32 %v142
  %v159 = vcvt.s32.f32 %v143
  %v160 = vcvt.s32.f32 %v144
  %v161 = vcvt.s32.f32 %v145
  %v162 = vcvt.s32.f32 %v146
  %v163 = vcvt.s32.f32 %v147
  %v164 = vcvt.s32.f32 %v148
  %v165 = vcvt.s32.f32 %v149
  %v166 = vcvt.s32.f32 %v150
  %v167 = vcvt.s32.f32 %v151
  %v168 = vcvt.s32.f32 %v152
  %v169 = vcvt.s32.f32 %v153
  %v170 = vcvt.s32.f32 %v154
  %v171 = vcvt.s32.f32 %v155
  %v172 = vld [vmem:[%s3] sm:$0xff]
  %v173 = vld [vmem:[%s3 + $0x8] sm:$0x3f]
  %vm174 = vcmask 130048
  %v176 = vsel %vm174, %v156, 0
  %v179 = vsel %vm174, %v157, 0
  %181 = vmatprep.subr.mxu0 0.0
  %182 = vmatpush1.msra.mxu0 %v17
  %183 = vmatprep.subr.mxu0 0.0
  %184 = vmatpush1.msra.mxu0 %v18
  %185 = vmatprep.subr.mxu0 0.0
  %186 = vmatpush1.msra.mxu0 0.0
  %187 = vmatprep.subr.mxu0 0.0
  %188 = vmatpush1.msra.mxu0 0.0
  %189 = vmatprep.subr.mxu0 0.0
  %190 = vmatpush1.msra.mxu0 0.0
  %191 = vmatprep.subr.mxu0 0.0
  %192 = vmatpush1.msra.mxu0 0.0
  %193 = vmatprep.subr.mxu0 0.0
  %194 = vmatpush1.msra.mxu0 0.0
  %195 = vmatprep.subr.mxu0 0.0
  %196 = vmatpush1.msra.mxu0 0.0
  %197 = vmatprep.subr.mxu0 0.0
  %198 = vmatpush1.msra.mxu0 0.0
  %199 = vmatprep.subr.mxu0 0.0
  %200 = vmatpush1.msra.mxu0 0.0
  %201 = vmatprep.subr.mxu0 0.0
  %202 = vmatpush1.msra.mxu0 0.0
  %203 = vmatprep.subr.mxu0 0.0
  %204 = vmatpush1.msra.mxu0 0.0
  %205 = vmatprep.subr.mxu0 0.0
  %206 = vmatpush1.msra.mxu0 0.0
  %207 = vmatprep.subr.mxu0 0.0
  %208 = vmatpush1.msra.mxu0 0.0
  %209 = vmatprep.subr.mxu0 0.0
  %210 = vmatpush1.msra.mxu0 0.0
  %211 = vmatprep.subr.mxu0 0.0
  %212 = vmatpush1.msra.mxu0 0.0
  %213 = vmatprep.subr.mxu0 0.0
  %214 = vmatpush1.msra.mxu0 0.0
  %215 = vmatprep.subr.mxu0 0.0
  %216 = vmatpush1.msra.mxu0 0.0
  %217 = vmatprep.subr.mxu0 0.0
  %218 = vmatpush1.msra.mxu0 0.0
  %219 = vmatprep.subr.mxu0 0.0
  %220 = vmatpush1.msra.mxu0 0.0
  %221 = vmatprep.subr.mxu0 0.0
  %222 = vmatpush1.msra.mxu0 0.0
  %223 = vmatprep.subr.mxu0 0.0
  %224 = vmatpush1.msra.mxu0 0.0
  %225 = vmatprep.subr.mxu0 0.0
  %226 = vmatpush1.msra.mxu0 0.0
  %227 = vmatprep.subr.mxu0 0.0
  %228 = vmatpush1.msra.mxu0 0.0
  %229 = vmatprep.subr.mxu0 0.0
  %230 = vmatpush1.msra.mxu0 0.0
  %231 = vmatprep.subr.mxu0 0.0
  %232 = vmatpush1.msra.mxu0 0.0
  %233 = vmatprep.subr.mxu0 0.0
  %234 = vmatpush1.msra.mxu0 0.0
  %235 = vmatprep.subr.mxu0 0.0
  %236 = vmatpush1.msra.mxu0 0.0
  %237 = vmatprep.subr.mxu0 0.0
  %238 = vmatpush1.msra.mxu0 0.0
  %239 = vmatprep.subr.mxu0 0.0
  %240 = vmatpush1.msra.mxu0 0.0
  %241 = vmatprep.subr.mxu0 0.0
  %242 = vmatpush1.msra.mxu0 0.0
  %243 = vmatprep.subr.mxu0 0.0
  %244 = vmatpush1.msra.mxu0 0.0
  %245 = vmatprep.mubr.f32.mxu0 0.0
  %246 = vmatmul.mubr.f32.gmra.mrb[0].mxu0 %v176
  %v247 = vpop.f32.mrb[0].mxu0
  %v248 = vadd.f32 %v172, %v247
  %v249 = vpop.f32.mrb[0].mxu0
  %250 = vmatprep.mubr.f32.mxu0 0.0
  %251 = vmatmul.mubr.f32.gmra.mrb[0].mxu0 %v179
  %v252 = vpop.f32.mrb[0].mxu0
  %v253 = vadd.f32 %v173, %v252
  %v254 = vpop.f32.mrb[0].mxu0
  %255 = vdwg.mxu0
  %v257 = vsel %vm174, %v158, 0
  %v260 = vsel %vm174, %v159, 0
  %262 = vmatprep.subr.mxu0 0.0
  %263 = vmatpush1.msra.mxu0 %v19
  %264 = vmatprep.subr.mxu0 0.0
  %265 = vmatpush1.msra.mxu0 %v20
  %266 = vmatprep.subr.mxu0 0.0
  %267 = vmatpush1.msra.mxu0 0.0
  %268 = vmatprep.subr.mxu0 0.0
  %269 = vmatpush1.msra.mxu0 0.0
  %270 = vmatprep.subr.mxu0 0.0
  %271 = vmatpush1.msra.mxu0 0.0
  %272 = vmatprep.subr.mxu0 0.0
  %273 = vmatpush1.msra.mxu0 0.0
  %274 = vmatprep.subr.mxu0 0.0
  %275 = vmatpush1.msra.mxu0 0.0
  %276 = vmatprep.subr.mxu0 0.0
  %277 = vmatpush1.msra.mxu0 0.0
  %278 = vmatprep.subr.mxu0 0.0
  %279 = vmatpush1.msra.mxu0 0.0
  %280 = vmatprep.subr.mxu0 0.0
  %281 = vmatpush1.msra.mxu0 0.0
  %282 = vmatprep.subr.mxu0 0.0
  %283 = vmatpush1.msra.mxu0 0.0
  %284 = vmatprep.subr.mxu0 0.0
  %285 = vmatpush1.msra.mxu0 0.0
  %286 = vmatprep.subr.mxu0 0.0
  %287 = vmatpush1.msra.mxu0 0.0
  %288 = vmatprep.subr.mxu0 0.0
  %289 = vmatpush1.msra.mxu0 0.0
  %290 = vmatprep.subr.mxu0 0.0
  %291 = vmatpush1.msra.mxu0 0.0
  %292 = vmatprep.subr.mxu0 0.0
  %293 = vmatpush1.msra.mxu0 0.0
  %294 = vmatprep.subr.mxu0 0.0
  %295 = vmatpush1.msra.mxu0 0.0
  %296 = vmatprep.subr.mxu0 0.0
  %297 = vmatpush1.msra.mxu0 0.0
  %298 = vmatprep.subr.mxu0 0.0
  %299 = vmatpush1.msra.mxu0 0.0
  %300 = vmatprep.subr.mxu0 0.0
  %301 = vmatpush1.msra.mxu0 0.0
  %302 = vmatprep.subr.mxu0 0.0
  %303 = vmatpush1.msra.mxu0 0.0
  %304 = vmatprep.subr.mxu0 0.0
  %305 = vmatpush1.msra.mxu0 0.0
  %306 = vmatprep.subr.mxu0 0.0
  %307 = vmatpush1.msra.mxu0 0.0
  %308 = vmatprep.subr.mxu0 0.0
  %309 = vmatpush1.msra.mxu0 0.0
  %310 = vmatprep.subr.mxu0 0.0
  %311 = vmatpush1.msra.mxu0 0.0
  %312 = vmatprep.subr.mxu0 0.0
  %313 = vmatpush1.msra.mxu0 0.0
  %314 = vmatprep.subr.mxu0 0.0
  %315 = vmatpush1.msra.mxu0 0.0
  %316 = vmatprep.subr.mxu0 0.0
  %317 = vmatpush1.msra.mxu0 0.0
  %318 = vmatprep.subr.mxu0 0.0
  %319 = vmatpush1.msra.mxu0 0.0
  %320 = vmatprep.subr.mxu0 0.0
  %321 = vmatpush1.msra.mxu0 0.0
  %322 = vmatprep.subr.mxu0 0.0
  %323 = vmatpush1.msra.mxu0 0.0
  %324 = vmatprep.subr.mxu0 0.0
  %325 = vmatpush1.msra.mxu0 0.0
  %326 = vmatprep.mubr.f32.mxu0 0.0
  %327 = vmatmul.mubr.f32.gmra.mrb[0].mxu0 %v257
  %v328 = vpop.f32.mrb[0].mxu0
  %v329 = vadd.f32 %v172, %v328
  %v330 = vpop.f32.mrb[0].mxu0
  %331 = vmatprep.mubr.f32.mxu0 0.0
  %332 = vmatmul.mubr.f32.gmra.mrb[0].mxu0 %v260
  %v333 = vpop.f32.mrb[0].mxu0
  %v334 = vadd.f32 %v173, %v333
  %v335 = vpop.f32.mrb[0].mxu0
  %336 = vdwg.mxu0
  %v338 = vsel %vm174, %v160, 0
  %v341 = vsel %vm174, %v161, 0
  %343 = vmatprep.subr.mxu0 0.0
  %344 = vmatpush1.msra.mxu0 %v21
  %345 = vmatprep.subr.mxu0 0.0
  %346 = vmatpush1.msra.mxu0 %v22
  %347 = vmatprep.subr.mxu0 0.0
  %348 = vmatpush1.msra.mxu0 0.0
  %349 = vmatprep.subr.mxu0 0.0
  %350 = vmatpush1.msra.mxu0 0.0
  %351 = vmatprep.subr.mxu0 0.0
  %352 = vmatpush1.msra.mxu0 0.0
  %353 = vmatprep.subr.mxu0 0.0
  %354 = vmatpush1.msra.mxu0 0.0
  %355 = vmatprep.subr.mxu0 0.0
  %356 = vmatpush1.msra.mxu0 0.0
  %357 = vmatprep.subr.mxu0 0.0
  %358 = vmatpush1.msra.mxu0 0.0
  %359 = vmatprep.subr.mxu0 0.0
  %360 = vmatpush1.msra.mxu0 0.0
  %361 = vmatprep.subr.mxu0 0.0
  %362 = vmatpush1.msra.mxu0 0.0
  %363 = vmatprep.subr.mxu0 0.0
  %364 = vmatpush1.msra.mxu0 0.0
  %365 = vmatprep.subr.mxu0 0.0
  %366 = vmatpush1.msra.mxu0 0.0
  %367 = vmatprep.subr.mxu0 0.0
  %368 = vmatpush1.msra.mxu0 0.0
  %369 = vmatprep.subr.mxu0 0.0
  %370 = vmatpush1.msra.mxu0 0.0
  %371 = vmatprep.subr.mxu0 0.0
  %372 = vmatpush1.msra.mxu0 0.0
  %373 = vmatprep.subr.mxu0 0.0
  %374 = vmatpush1.msra.mxu0 0.0
  %375 = vmatprep.subr.mxu0 0.0
  %376 = vmatpush1.msra.mxu0 0.0
  %377 = vmatprep.subr.mxu0 0.0
  %378 = vmatpush1.msra.mxu0 0.0
  %379 = vmatprep.subr.mxu0 0.0
  %380 = vmatpush1.msra.mxu0 0.0
  %381 = vmatprep.subr.mxu0 0.0
  %382 = vmatpush1.msra.mxu0 0.0
  %383 = vmatprep.subr.mxu0 0.0
  %384 = vmatpush1.msra.mxu0 0.0
  %385 = vmatprep.subr.mxu0 0.0
  %386 = vmatpush1.msra.mxu0 0.0
  %387 = vmatprep.subr.mxu0 0.0
  %388 = vmatpush1.msra.mxu0 0.0
  %389 = vmatprep.subr.mxu0 0.0
  %390 = vmatpush1.msra.mxu0 0.0
  %391 = vmatprep.subr.mxu0 0.0
  %392 = vmatpush1.msra.mxu0 0.0
  %393 = vmatprep.subr.mxu0 0.0
  %394 = vmatpush1.msra.mxu0 0.0
  %395 = vmatprep.subr.mxu0 0.0
  %396 = vmatpush1.msra.mxu0 0.0
  %397 = vmatprep.subr.mxu0 0.0
  %398 = vmatpush1.msra.mxu0 0.0
  %399 = vmatprep.subr.mxu0 0.0
  %400 = vmatpush1.msra.mxu0 0.0
  %401 = vmatprep.subr.mxu0 0.0
  %402 = vmatpush1.msra.mxu0 0.0
  %403 = vmatprep.subr.mxu0 0.0
  %404 = vmatpush1.msra.mxu0 0.0
  %405 = vmatprep.subr.mxu0 0.0
  %406 = vmatpush1.msra.mxu0 0.0
  %407 = vmatprep.mubr.f32.mxu0 0.0
  %408 = vmatmul.mubr.f32.gmra.mrb[0].mxu0 %v338
  %v409 = vpop.f32.mrb[0].mxu0
  %v410 = vadd.f32 %v172, %v409
  %v411 = vpop.f32.mrb[0].mxu0
  %412 = vmatprep.mubr.f32.mxu0 0.0
  %413 = vmatmul.mubr.f32.gmra.mrb[0].mxu0 %v341
  %v414 = vpop.f32.mrb[0].mxu0
  %v415 = vadd.f32 %v173, %v414
  %v416 = vpop.f32.mrb[0].mxu0
  %417 = vdwg.mxu0
  %v419 = vsel %vm174, %v162, 0
  %v422 = vsel %vm174, %v163, 0
  %424 = vmatprep.subr.mxu0 0.0
  %425 = vmatpush1.msra.mxu0 %v23
  %426 = vmatprep.subr.mxu0 0.0
  %427 = vmatpush1.msra.mxu0 %v24
  %428 = vmatprep.subr.mxu0 0.0
  %429 = vmatpush1.msra.mxu0 0.0
  %430 = vmatprep.subr.mxu0 0.0
  %431 = vmatpush1.msra.mxu0 0.0
  %432 = vmatprep.subr.mxu0 0.0
  %433 = vmatpush1.msra.mxu0 0.0
  %434 = vmatprep.subr.mxu0 0.0
  %435 = vmatpush1.msra.mxu0 0.0
  %436 = vmatprep.subr.mxu0 0.0
  %437 = vmatpush1.msra.mxu0 0.0
  %438 = vmatprep.subr.mxu0 0.0
  %439 = vmatpush1.msra.mxu0 0.0
  %440 = vmatprep.subr.mxu0 0.0
  %441 = vmatpush1.msra.mxu0 0.0
  %442 = vmatprep.subr.mxu0 0.0
  %443 = vmatpush1.msra.mxu0 0.0
  %444 = vmatprep.subr.mxu0 0.0
  %445 = vmatpush1.msra.mxu0 0.0
  %446 = vmatprep.subr.mxu0 0.0
  %447 = vmatpush1.msra.mxu0 0.0
  %448 = vmatprep.subr.mxu0 0.0
  %449 = vmatpush1.msra.mxu0 0.0
  %450 = vmatprep.subr.mxu0 0.0
  %451 = vmatpush1.msra.mxu0 0.0
  %452 = vmatprep.subr.mxu0 0.0
  %453 = vmatpush1.msra.mxu0 0.0
  %454 = vmatprep.subr.mxu0 0.0
  %455 = vmatpush1.msra.mxu0 0.0
  %456 = vmatprep.subr.mxu0 0.0
  %457 = vmatpush1.msra.mxu0 0.0
  %458 = vmatprep.subr.mxu0 0.0
  %459 = vmatpush1.msra.mxu0 0.0
  %460 = vmatprep.subr.mxu0 0.0
  %461 = vmatpush1.msra.mxu0 0.0
  %462 = vmatprep.subr.mxu0 0.0
  %463 = vmatpush1.msra.mxu0 0.0
  %464 = vmatprep.subr.mxu0 0.0
  %465 = vmatpush1.msra.mxu0 0.0
  %466 = vmatprep.subr.mxu0 0.0
  %467 = vmatpush1.msra.mxu0 0.0
  %468 = vmatprep.subr.mxu0 0.0
  %469 = vmatpush1.msra.mxu0 0.0
  %470 = vmatprep.subr.mxu0 0.0
  %471 = vmatpush1.msra.mxu0 0.0
  %472 = vmatprep.subr.mxu0 0.0
  %473 = vmatpush1.msra.mxu0 0.0
  %474 = vmatprep.subr.mxu0 0.0
  %475 = vmatpush1.msra.mxu0 0.0
  %476 = vmatprep.subr.mxu0 0.0
  %477 = vmatpush1.msra.mxu0 0.0
  %478 = vmatprep.subr.mxu0 0.0
  %479 = vmatpush1.msra.mxu0 0.0
  %480 = vmatprep.subr.mxu0 0.0
  %481 = vmatpush1.msra.mxu0 0.0
  %482 = vmatprep.subr.mxu0 0.0
  %483 = vmatpush1.msra.mxu0 0.0
  %484 = vmatprep.subr.mxu0 0.0
  %485 = vmatpush1.msra.mxu0 0.0
  %486 = vmatprep.subr.mxu0 0.0
  %487 = vmatpush1.msra.mxu0 0.0
  %488 = vmatprep.mubr.f32.mxu0 0.0
  %489 = vmatmul.mubr.f32.gmra.mrb[0].mxu0 %v419
  %v490 = vpop.f32.mrb[0].mxu0
  %v491 = vadd.f32 %v172, %v490
  %v492 = vpop.f32.mrb[0].mxu0
  %493 = vmatprep.mubr.f32.mxu0 0.0
  %494 = vmatmul.mubr.f32.gmra.mrb[0].mxu0 %v422
  %v495 = vpop.f32.mrb[0].mxu0
  %v496 = vadd.f32 %v173, %v495
  %v497 = vpop.f32.mrb[0].mxu0
  %498 = vdwg.mxu0
  %v500 = vsel %vm174, %v164, 0
  %v503 = vsel %vm174, %v165, 0
  %505 = vmatprep.subr.mxu0 0.0
  %506 = vmatpush1.msra.mxu0 %v25
  %507 = vmatprep.subr.mxu0 0.0
  %508 = vmatpush1.msra.mxu0 %v26
  %509 = vmatprep.subr.mxu0 0.0
  %510 = vmatpush1.msra.mxu0 0.0
  %511 = vmatprep.subr.mxu0 0.0
  %512 = vmatpush1.msra.mxu0 0.0
  %513 = vmatprep.subr.mxu0 0.0
  %514 = vmatpush1.msra.mxu0 0.0
  %515 = vmatprep.subr.mxu0 0.0
  %516 = vmatpush1.msra.mxu0 0.0
  %517 = vmatprep.subr.mxu0 0.0
  %518 = vmatpush1.msra.mxu0 0.0
  %519 = vmatprep.subr.mxu0 0.0
  %520 = vmatpush1.msra.mxu0 0.0
  %521 = vmatprep.subr.mxu0 0.0
  %522 = vmatpush1.msra.mxu0 0.0
  %523 = vmatprep.subr.mxu0 0.0
  %524 = vmatpush1.msra.mxu0 0.0
  %525 = vmatprep.subr.mxu0 0.0
  %526 = vmatpush1.msra.mxu0 0.0
  %527 = vmatprep.subr.mxu0 0.0
  %528 = vmatpush1.msra.mxu0 0.0
  %529 = vmatprep.subr.mxu0 0.0
  %530 = vmatpush1.msra.mxu0 0.0
  %531 = vmatprep.subr.mxu0 0.0
  %532 = vmatpush1.msra.mxu0 0.0
  %533 = vmatprep.subr.mxu0 0.0
  %534 = vmatpush1.msra.mxu0 0.0
  %535 = vmatprep.subr.mxu0 0.0
  %536 = vmatpush1.msra.mxu0 0.0
  %537 = vmatprep.subr.mxu0 0.0
  %538 = vmatpush1.msra.mxu0 0.0
  %539 = vmatprep.subr.mxu0 0.0
  %540 = vmatpush1.msra.mxu0 0.0
  %541 = vmatprep.subr.mxu0 0.0
  %542 = vmatpush1.msra.mxu0 0.0
  %543 = vmatprep.subr.mxu0 0.0
  %544 = vmatpush1.msra.mxu0 0.0
  %545 = vmatprep.subr.mxu0 0.0
  %546 = vmatpush1.msra.mxu0 0.0
  %547 = vmatprep.subr.mxu0 0.0
  %548 = vmatpush1.msra.mxu0 0.0
  %549 = vmatprep.subr.mxu0 0.0
  %550 = vmatpush1.msra.mxu0 0.0
  %551 = vmatprep.subr.mxu0 0.0
  %552 = vmatpush1.msra.mxu0 0.0
  %553 = vmatprep.subr.mxu0 0.0
  %554 = vmatpush1.msra.mxu0 0.0
  %555 = vmatprep.subr.mxu0 0.0
  %556 = vmatpush1.msra.mxu0 0.0
  %557 = vmatprep.subr.mxu0 0.0
  %558 = vmatpush1.msra.mxu0 0.0
  %559 = vmatprep.subr.mxu0 0.0
  %560 = vmatpush1.msra.mxu0 0.0
  %561 = vmatprep.subr.mxu0 0.0
  %562 = vmatpush1.msra.mxu0 0.0
  %563 = vmatprep.subr.mxu0 0.0
  %564 = vmatpush1.msra.mxu0 0.0
  %565 = vmatprep.subr.mxu0 0.0
  %566 = vmatpush1.msra.mxu0 0.0
  %567 = vmatprep.subr.mxu0 0.0
  %568 = vmatpush1.msra.mxu0 0.0
  %569 = vmatprep.mubr.f32.mxu0 0.0
  %570 = vmatmul.mubr.f32.gmra.mrb[0].mxu0 %v500
  %v571 = vpop.f32.mrb[0].mxu0
  %v572 = vadd.f32 %v172, %v571
  %v573 = vpop.f32.mrb[0].mxu0
  %574 = vmatprep.mubr.f32.mxu0 0.0
  %575 = vmatmul.mubr.f32.gmra.mrb[0].mxu0 %v503
  %v576 = vpop.f32.mrb[0].mxu0
  %v577 = vadd.f32 %v173, %v576
  %v578 = vpop.f32.mrb[0].mxu0
  %579 = vdwg.mxu0
  %v581 = vsel %vm174, %v166, 0
  %v584 = vsel %vm174, %v167, 0
  %586 = vmatprep.subr.mxu0 0.0
  %587 = vmatpush1.msra.mxu0 %v27
  %588 = vmatprep.subr.mxu0 0.0
  %589 = vmatpush1.msra.mxu0 %v28
  %590 = vmatprep.subr.mxu0 0.0
  %591 = vmatpush1.msra.mxu0 0.0
  %592 = vmatprep.subr.mxu0 0.0
  %593 = vmatpush1.msra.mxu0 0.0
  %594 = vmatprep.subr.mxu0 0.0
  %595 = vmatpush1.msra.mxu0 0.0
  %596 = vmatprep.subr.mxu0 0.0
  %597 = vmatpush1.msra.mxu0 0.0
  %598 = vmatprep.subr.mxu0 0.0
  %599 = vmatpush1.msra.mxu0 0.0
  %600 = vmatprep.subr.mxu0 0.0
  %601 = vmatpush1.msra.mxu0 0.0
  %602 = vmatprep.subr.mxu0 0.0
  %603 = vmatpush1.msra.mxu0 0.0
  %604 = vmatprep.subr.mxu0 0.0
  %605 = vmatpush1.msra.mxu0 0.0
  %606 = vmatprep.subr.mxu0 0.0
  %607 = vmatpush1.msra.mxu0 0.0
  %608 = vmatprep.subr.mxu0 0.0
  %609 = vmatpush1.msra.mxu0 0.0
  %610 = vmatprep.subr.mxu0 0.0
  %611 = vmatpush1.msra.mxu0 0.0
  %612 = vmatprep.subr.mxu0 0.0
  %613 = vmatpush1.msra.mxu0 0.0
  %614 = vmatprep.subr.mxu0 0.0
  %615 = vmatpush1.msra.mxu0 0.0
  %616 = vmatprep.subr.mxu0 0.0
  %617 = vmatpush1.msra.mxu0 0.0
  %618 = vmatprep.subr.mxu0 0.0
  %619 = vmatpush1.msra.mxu0 0.0
  %620 = vmatprep.subr.mxu0 0.0
  %621 = vmatpush1.msra.mxu0 0.0
  %622 = vmatprep.subr.mxu0 0.0
  %623 = vmatpush1.msra.mxu0 0.0
  %624 = vmatprep.subr.mxu0 0.0
  %625 = vmatpush1.msra.mxu0 0.0
  %626 = vmatprep.subr.mxu0 0.0
  %627 = vmatpush1.msra.mxu0 0.0
  %628 = vmatprep.subr.mxu0 0.0
  %629 = vmatpush1.msra.mxu0 0.0
  %630 = vmatprep.subr.mxu0 0.0
  %631 = vmatpush1.msra.mxu0 0.0
  %632 = vmatprep.subr.mxu0 0.0
  %633 = vmatpush1.msra.mxu0 0.0
  %634 = vmatprep.subr.mxu0 0.0
  %635 = vmatpush1.msra.mxu0 0.0
  %636 = vmatprep.subr.mxu0 0.0
  %637 = vmatpush1.msra.mxu0 0.0
  %638 = vmatprep.subr.mxu0 0.0
  %639 = vmatpush1.msra.mxu0 0.0
  %640 = vmatprep.subr.mxu0 0.0
  %641 = vmatpush1.msra.mxu0 0.0
  %642 = vmatprep.subr.mxu0 0.0
  %643 = vmatpush1.msra.mxu0 0.0
  %644 = vmatprep.subr.mxu0 0.0
  %645 = vmatpush1.msra.mxu0 0.0
  %646 = vmatprep.subr.mxu0 0.0
  %647 = vmatpush1.msra.mxu0 0.0
  %648 = vmatprep.subr.mxu0 0.0
  %649 = vmatpush1.msra.mxu0 0.0
  %650 = vmatprep.mubr.f32.mxu0 0.0
  %651 = vmatmul.mubr.f32.gmra.mrb[0].mxu0 %v581
  %v652 = vpop.f32.mrb[0].mxu0
  %v653 = vadd.f32 %v172, %v652
  %v654 = vpop.f32.mrb[0].mxu0
  %655 = vmatprep.mubr.f32.mxu0 0.0
  %656 = vmatmul.mubr.f32.gmra.mrb[0].mxu0 %v584
  %v657 = vpop.f32.mrb[0].mxu0
  %v658 = vadd.f32 %v173, %v657
  %v659 = vpop.f32.mrb[0].mxu0
  %660 = vdwg.mxu0
  %v662 = vsel %vm174, %v168, 0
  %v665 = vsel %vm174, %v169, 0
  %667 = vmatprep.subr.mxu0 0.0
  %668 = vmatpush1.msra.mxu0 %v29
  %669 = vmatprep.subr.mxu0 0.0
  %670 = vmatpush1.msra.mxu0 %v30
  %671 = vmatprep.subr.mxu0 0.0
  %672 = vmatpush1.msra.mxu0 0.0
  %673 = vmatprep.subr.mxu0 0.0
  %674 = vmatpush1.msra.mxu0 0.0
  %675 = vmatprep.subr.mxu0 0.0
  %676 = vmatpush1.msra.mxu0 0.0
  %677 = vmatprep.subr.mxu0 0.0
  %678 = vmatpush1.msra.mxu0 0.0
  %679 = vmatprep.subr.mxu0 0.0
  %680 = vmatpush1.msra.mxu0 0.0
  %681 = vmatprep.subr.mxu0 0.0
  %682 = vmatpush1.msra.mxu0 0.0
  %683 = vmatprep.subr.mxu0 0.0
  %684 = vmatpush1.msra.mxu0 0.0
  %685 = vmatprep.subr.mxu0 0.0
  %686 = vmatpush1.msra.mxu0 0.0
  %687 = vmatprep.subr.mxu0 0.0
  %688 = vmatpush1.msra.mxu0 0.0
  %689 = vmatprep.subr.mxu0 0.0
  %690 = vmatpush1.msra.mxu0 0.0
  %691 = vmatprep.subr.mxu0 0.0
  %692 = vmatpush1.msra.mxu0 0.0
  %693 = vmatprep.subr.mxu0 0.0
  %694 = vmatpush1.msra.mxu0 0.0
  %695 = vmatprep.subr.mxu0 0.0
  %696 = vmatpush1.msra.mxu0 0.0
  %697 = vmatprep.subr.mxu0 0.0
  %698 = vmatpush1.msra.mxu0 0.0
  %699 = vmatprep.subr.mxu0 0.0
  %700 = vmatpush1.msra.mxu0 0.0
  %701 = vmatprep.subr.mxu0 0.0
  %702 = vmatpush1.msra.mxu0 0.0
  %703 = vmatprep.subr.mxu0 0.0
  %704 = vmatpush1.msra.mxu0 0.0
  %705 = vmatprep.subr.mxu0 0.0
  %706 = vmatpush1.msra.mxu0 0.0
  %707 = vmatprep.subr.mxu0 0.0
  %708 = vmatpush1.msra.mxu0 0.0
  %709 = vmatprep.subr.mxu0 0.0
  %710 = vmatpush1.msra.mxu0 0.0
  %711 = vmatprep.subr.mxu0 0.0
  %712 = vmatpush1.msra.mxu0 0.0
  %713 = vmatprep.subr.mxu0 0.0
  %714 = vmatpush1.msra.mxu0 0.0
  %715 = vmatprep.subr.mxu0 0.0
  %716 = vmatpush1.msra.mxu0 0.0
  %717 = vmatprep.subr.mxu0 0.0
  %718 = vmatpush1.msra.mxu0 0.0
  %719 = vmatprep.subr.mxu0 0.0
  %720 = vmatpush1.msra.mxu0 0.0
  %721 = vmatprep.subr.mxu0 0.0
  %722 = vmatpush1.msra.mxu0 0.0
  %723 = vmatprep.subr.mxu0 0.0
  %724 = vmatpush1.msra.mxu0 0.0
  %725 = vmatprep.subr.mxu0 0.0
  %726 = vmatpush1.msra.mxu0 0.0
  %727 = vmatprep.subr.mxu0 0.0
  %728 = vmatpush1.msra.mxu0 0.0
  %729 = vmatprep.subr.mxu0 0.0
  %730 = vmatpush1.msra.mxu0 0.0
  %731 = vmatprep.mubr.f32.mxu0 0.0
  %732 = vmatmul.mubr.f32.gmra.mrb[0].mxu0 %v662
  %v733 = vpop.f32.mrb[0].mxu0
  %v734 = vadd.f32 %v172, %v733
  %v735 = vpop.f32.mrb[0].mxu0
  %736 = vmatprep.mubr.f32.mxu0 0.0
  %737 = vmatmul.mubr.f32.gmra.mrb[0].mxu0 %v665
  %v738 = vpop.f32.mrb[0].mxu0
  %v739 = vadd.f32 %v173, %v738
  %v740 = vpop.f32.mrb[0].mxu0
  %741 = vdwg.mxu0
  %v743 = vsel %vm174, %v170, 0
  %v746 = vsel %vm174, %v171, 0
  %748 = vmatprep.subr.mxu0 0.0
  %749 = vmatpush1.msra.mxu0 %v31
  %750 = vmatprep.subr.mxu0 0.0
  %751 = vmatpush1.msra.mxu0 %v32
  %752 = vmatprep.subr.mxu0 0.0
  %753 = vmatpush1.msra.mxu0 0.0
  %754 = vmatprep.subr.mxu0 0.0
  %755 = vmatpush1.msra.mxu0 0.0
  %756 = vmatprep.subr.mxu0 0.0
  %757 = vmatpush1.msra.mxu0 0.0
  %758 = vmatprep.subr.mxu0 0.0
  %759 = vmatpush1.msra.mxu0 0.0
  %760 = vmatprep.subr.mxu0 0.0
  %761 = vmatpush1.msra.mxu0 0.0
  %762 = vmatprep.subr.mxu0 0.0
  %763 = vmatpush1.msra.mxu0 0.0
  %764 = vmatprep.subr.mxu0 0.0
  %765 = vmatpush1.msra.mxu0 0.0
  %766 = vmatprep.subr.mxu0 0.0
  %767 = vmatpush1.msra.mxu0 0.0
  %768 = vmatprep.subr.mxu0 0.0
  %769 = vmatpush1.msra.mxu0 0.0
  %770 = vmatprep.subr.mxu0 0.0
  %771 = vmatpush1.msra.mxu0 0.0
  %772 = vmatprep.subr.mxu0 0.0
  %773 = vmatpush1.msra.mxu0 0.0
  %774 = vmatprep.subr.mxu0 0.0
  %775 = vmatpush1.msra.mxu0 0.0
  %776 = vmatprep.subr.mxu0 0.0
  %777 = vmatpush1.msra.mxu0 0.0
  %778 = vmatprep.subr.mxu0 0.0
  %779 = vmatpush1.msra.mxu0 0.0
  %780 = vmatprep.subr.mxu0 0.0
  %781 = vmatpush1.msra.mxu0 0.0
  %782 = vmatprep.subr.mxu0 0.0
  %783 = vmatpush1.msra.mxu0 0.0
  %784 = vmatprep.subr.mxu0 0.0
  %785 = vmatpush1.msra.mxu0 0.0
  %786 = vmatprep.subr.mxu0 0.0
  %787 = vmatpush1.msra.mxu0 0.0
  %788 = vmatprep.subr.mxu0 0.0
  %789 = vmatpush1.msra.mxu0 0.0
  %790 = vmatprep.subr.mxu0 0.0
  %791 = vmatpush1.msra.mxu0 0.0
  %792 = vmatprep.subr.mxu0 0.0
  %793 = vmatpush1.msra.mxu0 0.0
  %794 = vmatprep.subr.mxu0 0.0
  %795 = vmatpush1.msra.mxu0 0.0
  %796 = vmatprep.subr.mxu0 0.0
  %797 = vmatpush1.msra.mxu0 0.0
  %798 = vmatprep.subr.mxu0 0.0
  %799 = vmatpush1.msra.mxu0 0.0
  %800 = vmatprep.subr.mxu0 0.0
  %801 = vmatpush1.msra.mxu0 0.0
  %802 = vmatprep.subr.mxu0 0.0
  %803 = vmatpush1.msra.mxu0 0.0
  %804 = vmatprep.subr.mxu0 0.0
  %805 = vmatpush1.msra.mxu0 0.0
  %806 = vmatprep.subr.mxu0 0.0
  %807 = vmatpush1.msra.mxu0 0.0
  %808 = vmatprep.subr.mxu0 0.0
  %809 = vmatpush1.msra.mxu0 0.0
  %810 = vmatprep.subr.mxu0 0.0
  %811 = vmatpush1.msra.mxu0 0.0
  %812 = vmatprep.mubr.f32.mxu0 0.0
  %813 = vmatmul.mubr.f32.gmra.mrb[0].mxu0 %v743
  %v814 = vpop.f32.mrb[0].mxu0
  %v815 = vadd.f32 %v172, %v814
  %v816 = vpop.f32.mrb[0].mxu0
  %817 = vmatprep.mubr.f32.mxu0 0.0
  %818 = vmatmul.mubr.f32.gmra.mrb[0].mxu0 %v746
  %v819 = vpop.f32.mrb[0].mxu0
  %v820 = vadd.f32 %v173, %v819
  %v821 = vpop.f32.mrb[0].mxu0
  %822 = vdwg.mxu0
  %v831 = vrot.slane %v248, 6
  %v832 = vrot.slane %v329, 6
  %v833 = vrot.slane %v410, 6
  %v834 = vrot.slane %v491, 6
  %v835 = vrot.slane %v572, 6
  %v836 = vrot.slane %v653, 6
  %v837 = vrot.slane %v734, 6
  %v838 = vrot.slane %v815, 6
  %v847 = vrot.slane %v248, 7
  %v848 = vrot.slane %v329, 7
  %v849 = vrot.slane %v410, 7
  %v850 = vrot.slane %v491, 7
  %v851 = vrot.slane %v572, 7
  %v852 = vrot.slane %v653, 7
  %v853 = vrot.slane %v734, 7
  %v854 = vrot.slane %v815, 7
  %vm863 = vcmask 1040384
  %v864 = vsel %vm863, %v831, %v847
  %v865 = vsel %vm863, %v832, %v848
  %v866 = vsel %vm863, %v833, %v849
  %v867 = vsel %vm863, %v834, %v850
  %v868 = vsel %vm863, %v835, %v851
  %v869 = vsel %vm863, %v836, %v852
  %v870 = vsel %vm863, %v837, %v853
  %v871 = vsel %vm863, %v838, %v854
  %vm872 = vcmask 261120
  %v874 = vsel %vm872, %v864, 0
  %v876 = vsel %vm872, %v248, 0
  %v879 = vsel %vm872, %v253, 0
  %881 = vmatprep.subr.mxu0 0.0
  %882 = vmatpush1.xpose.msra.mxu0 %v876
  %883 = vmatprep.subr.mxu0 0.0
  %884 = vmatpush1.xpose.msra.mxu0 %v879
  %885 = vmatprep.subr.mxu0 0.0
  %886 = vmatpush1.xpose.msra.mxu0 0.0
  %887 = vmatprep.subr.mxu0 0.0
  %888 = vmatpush1.xpose.msra.mxu0 0.0
  %889 = vmatprep.subr.mxu0 0.0
  %890 = vmatpush1.xpose.msra.mxu0 0.0
  %891 = vmatprep.subr.mxu0 0.0
  %892 = vmatpush1.xpose.msra.mxu0 0.0
  %893 = vmatprep.subr.mxu0 0.0
  %894 = vmatpush1.xpose.msra.mxu0 0.0
  %895 = vmatprep.subr.mxu0 0.0
  %896 = vmatpush1.xpose.msra.mxu0 0.0
  %897 = vmatprep.subr.mxu0 0.0
  %898 = vmatpush1.xpose.msra.mxu0 0.0
  %899 = vmatprep.subr.mxu0 0.0
  %900 = vmatpush1.xpose.msra.mxu0 0.0
  %901 = vmatprep.subr.mxu0 0.0
  %902 = vmatpush1.xpose.msra.mxu0 0.0
  %903 = vmatprep.subr.mxu0 0.0
  %904 = vmatpush1.xpose.msra.mxu0 0.0
  %905 = vmatprep.subr.mxu0 0.0
  %906 = vmatpush1.xpose.msra.mxu0 0.0
  %907 = vmatprep.subr.mxu0 0.0
  %908 = vmatpush1.xpose.msra.mxu0 0.0
  %909 = vmatprep.subr.mxu0 0.0
  %910 = vmatpush1.xpose.msra.mxu0 0.0
  %911 = vmatprep.subr.mxu0 0.0
  %912 = vmatpush1.xpose.msra.mxu0 0.0
  %913 = vmatprep.subr.mxu0 0.0
  %914 = vmatpush1.xpose.msra.mxu0 0.0
  %915 = vmatprep.subr.mxu0 0.0
  %916 = vmatpush1.xpose.msra.mxu0 0.0
  %917 = vmatprep.subr.mxu0 0.0
  %918 = vmatpush1.xpose.msra.mxu0 0.0
  %919 = vmatprep.subr.mxu0 0.0
  %920 = vmatpush1.xpose.msra.mxu0 0.0
  %921 = vmatprep.subr.mxu0 0.0
  %922 = vmatpush1.xpose.msra.mxu0 0.0
  %923 = vmatprep.subr.mxu0 0.0
  %924 = vmatpush1.xpose.msra.mxu0 0.0
  %925 = vmatprep.subr.mxu0 0.0
  %926 = vmatpush1.xpose.msra.mxu0 0.0
  %927 = vmatprep.subr.mxu0 0.0
  %928 = vmatpush1.xpose.msra.mxu0 0.0
  %929 = vmatprep.subr.mxu0 0.0
  %930 = vmatpush1.xpose.msra.mxu0 0.0
  %931 = vmatprep.subr.mxu0 0.0
  %932 = vmatpush1.xpose.msra.mxu0 0.0
  %933 = vmatprep.subr.mxu0 0.0
  %934 = vmatpush1.xpose.msra.mxu0 0.0
  %935 = vmatprep.subr.mxu0 0.0
  %936 = vmatpush1.xpose.msra.mxu0 0.0
  %937 = vmatprep.subr.mxu0 0.0
  %938 = vmatpush1.xpose.msra.mxu0 0.0
  %939 = vmatprep.subr.mxu0 0.0
  %940 = vmatpush1.xpose.msra.mxu0 0.0
  %941 = vmatprep.subr.mxu0 0.0
  %942 = vmatpush1.xpose.msra.mxu0 0.0
  %943 = vmatprep.subr.mxu0 0.0
  %944 = vmatpush1.xpose.msra.mxu0 0.0
  %945 = vmatprep.mubr.f32.mxu0 0.0
  %946 = vmatmul.mubr.f32.gmra.mrb[0].mxu0 %v874
  %v947 = vpop.f32.mrb[0].mxu0
  %v948 = vadd.f32 0.0, %v947
  %v949 = vpop.f32.mrb[0].mxu0
  %950 = vdwg.mxu0
  %v952 = vsel %vm872, %v865, 0
  %v954 = vsel %vm872, %v329, 0
  %v957 = vsel %vm872, %v334, 0
  %959 = vmatprep.subr.mxu0 0.0
  %960 = vmatpush1.xpose.msra.mxu0 %v954
  %961 = vmatprep.subr.mxu0 0.0
  %962 = vmatpush1.xpose.msra.mxu0 %v957
  %963 = vmatprep.subr.mxu0 0.0
  %964 = vmatpush1.xpose.msra.mxu0 0.0
  %965 = vmatprep.subr.mxu0 0.0
  %966 = vmatpush1.xpose.msra.mxu0 0.0
  %967 = vmatprep.subr.mxu0 0.0
  %968 = vmatpush1.xpose.msra.mxu0 0.0
  %969 = vmatprep.subr.mxu0 0.0
  %970 = vmatpush1.xpose.msra.mxu0 0.0
  %971 = vmatprep.subr.mxu0 0.0
  %972 = vmatpush1.xpose.msra.mxu0 0.0
  %973 = vmatprep.subr.mxu0 0.0
  %974 = vmatpush1.xpose.msra.mxu0 0.0
  %975 = vmatprep.subr.mxu0 0.0
  %976 = vmatpush1.xpose.msra.mxu0 0.0
  %977 = vmatprep.subr.mxu0 0.0
  %978 = vmatpush1.xpose.msra.mxu0 0.0
  %979 = vmatprep.subr.mxu0 0.0
  %980 = vmatpush1.xpose.msra.mxu0 0.0
  %981 = vmatprep.subr.mxu0 0.0
  %982 = vmatpush1.xpose.msra.mxu0 0.0
  %983 = vmatprep.subr.mxu0 0.0
  %984 = vmatpush1.xpose.msra.mxu0 0.0
  %985 = vmatprep.subr.mxu0 0.0
  %986 = vmatpush1.xpose.msra.mxu0 0.0
  %987 = vmatprep.subr.mxu0 0.0
  %988 = vmatpush1.xpose.msra.mxu0 0.0
  %989 = vmatprep.subr.mxu0 0.0
  %990 = vmatpush1.xpose.msra.mxu0 0.0
  %991 = vmatprep.subr.mxu0 0.0
  %992 = vmatpush1.xpose.msra.mxu0 0.0
  %993 = vmatprep.subr.mxu0 0.0
  %994 = vmatpush1.xpose.msra.mxu0 0.0
  %995 = vmatprep.subr.mxu0 0.0
  %996 = vmatpush1.xpose.msra.mxu0 0.0
  %997 = vmatprep.subr.mxu0 0.0
  %998 = vmatpush1.xpose.msra.mxu0 0.0
  %999 = vmatprep.subr.mxu0 0.0
  %1000 = vmatpush1.xpose.msra.mxu0 0.0
  %1001 = vmatprep.subr.mxu0 0.0
  %1002 = vmatpush1.xpose.msra.mxu0 0.0
  %1003 = vmatprep.subr.mxu0 0.0
  %1004 = vmatpush1.xpose.msra.mxu0 0.0
  %1005 = vmatprep.subr.mxu0 0.0
  %1006 = vmatpush1.xpose.msra.mxu0 0.0
  %1007 = vmatprep.subr.mxu0 0.0
  %1008 = vmatpush1.xpose.msra.mxu0 0.0
  %1009 = vmatprep.subr.mxu0 0.0
  %1010 = vmatpush1.xpose.msra.mxu0 0.0
  %1011 = vmatprep.subr.mxu0 0.0
  %1012 = vmatpush1.xpose.msra.mxu0 0.0
  %1013 = vmatprep.subr.mxu0 0.0
  %1014 = vmatpush1.xpose.msra.mxu0 0.0
  %1015 = vmatprep.subr.mxu0 0.0
  %1016 = vmatpush1.xpose.msra.mxu0 0.0
  %1017 = vmatprep.subr.mxu0 0.0
  %1018 = vmatpush1.xpose.msra.mxu0 0.0
  %1019 = vmatprep.subr.mxu0 0.0
  %1020 = vmatpush1.xpose.msra.mxu0 0.0
  %1021 = vmatprep.subr.mxu0 0.0
  %1022 = vmatpush1.xpose.msra.mxu0 0.0
  %1023 = vmatprep.mubr.f32.mxu0 0.0
  %1024 = vmatmul.mubr.f32.gmra.mrb[0].mxu0 %v952
  %v1025 = vpop.f32.mrb[0].mxu0
  %v1026 = vadd.f32 0.0, %v1025
  %v1027 = vpop.f32.mrb[0].mxu0
  %1028 = vdwg.mxu0
  %v1030 = vsel %vm872, %v866, 0
  %v1032 = vsel %vm872, %v410, 0
  %v1035 = vsel %vm872, %v415, 0
  %1037 = vmatprep.subr.mxu0 0.0
  %1038 = vmatpush1.xpose.msra.mxu0 %v1032
  %1039 = vmatprep.subr.mxu0 0.0
  %1040 = vmatpush1.xpose.msra.mxu0 %v1035
  %1041 = vmatprep.subr.mxu0 0.0
  %1042 = vmatpush1.xpose.msra.mxu0 0.0
  %1043 = vmatprep.subr.mxu0 0.0
  %1044 = vmatpush1.xpose.msra.mxu0 0.0
  %1045 = vmatprep.subr.mxu0 0.0
  %1046 = vmatpush1.xpose.msra.mxu0 0.0
  %1047 = vmatprep.subr.mxu0 0.0
  %1048 = vmatpush1.xpose.msra.mxu0 0.0
  %1049 = vmatprep.subr.mxu0 0.0
  %1050 = vmatpush1.xpose.msra.mxu0 0.0
  %1051 = vmatprep.subr.mxu0 0.0
  %1052 = vmatpush1.xpose.msra.mxu0 0.0
  %1053 = vmatprep.subr.mxu0 0.0
  %1054 = vmatpush1.xpose.msra.mxu0 0.0
  %1055 = vmatprep.subr.mxu0 0.0
  %1056 = vmatpush1.xpose.msra.mxu0 0.0
  %1057 = vmatprep.subr.mxu0 0.0
  %1058 = vmatpush1.xpose.msra.mxu0 0.0
  %1059 = vmatprep.subr.mxu0 0.0
  %1060 = vmatpush1.xpose.msra.mxu0 0.0
  %1061 = vmatprep.subr.mxu0 0.0
  %1062 = vmatpush1.xpose.msra.mxu0 0.0
  %1063 = vmatprep.subr.mxu0 0.0
  %1064 = vmatpush1.xpose.msra.mxu0 0.0
  %1065 = vmatprep.subr.mxu0 0.0
  %1066 = vmatpush1.xpose.msra.mxu0 0.0
  %1067 = vmatprep.subr.mxu0 0.0
  %1068 = vmatpush1.xpose.msra.mxu0 0.0
  %1069 = vmatprep.subr.mxu0 0.0
  %1070 = vmatpush1.xpose.msra.mxu0 0.0
  %1071 = vmatprep.subr.mxu0 0.0
  %1072 = vmatpush1.xpose.msra.mxu0 0.0
  %1073 = vmatprep.subr.mxu0 0.0
  %1074 = vmatpush1.xpose.msra.mxu0 0.0
  %1075 = vmatprep.subr.mxu0 0.0
  %1076 = vmatpush1.xpose.msra.mxu0 0.0
  %1077 = vmatprep.subr.mxu0 0.0
  %1078 = vmatpush1.xpose.msra.mxu0 0.0
  %1079 = vmatprep.subr.mxu0 0.0
  %1080 = vmatpush1.xpose.msra.mxu0 0.0
  %1081 = vmatprep.subr.mxu0 0.0
  %1082 = vmatpush1.xpose.msra.mxu0 0.0
  %1083 = vmatprep.subr.mxu0 0.0
  %1084 = vmatpush1.xpose.msra.mxu0 0.0
  %1085 = vmatprep.subr.mxu0 0.0
  %1086 = vmatpush1.xpose.msra.mxu0 0.0
  %1087 = vmatprep.subr.mxu0 0.0
  %1088 = vmatpush1.xpose.msra.mxu0 0.0
  %1089 = vmatprep.subr.mxu0 0.0
  %1090 = vmatpush1.xpose.msra.mxu0 0.0
  %1091 = vmatprep.subr.mxu0 0.0
  %1092 = vmatpush1.xpose.msra.mxu0 0.0
  %1093 = vmatprep.subr.mxu0 0.0
  %1094 = vmatpush1.xpose.msra.mxu0 0.0
  %1095 = vmatprep.subr.mxu0 0.0
  %1096 = vmatpush1.xpose.msra.mxu0 0.0
  %1097 = vmatprep.subr.mxu0 0.0
  %1098 = vmatpush1.xpose.msra.mxu0 0.0
  %1099 = vmatprep.subr.mxu0 0.0
  %1100 = vmatpush1.xpose.msra.mxu0 0.0
  %1101 = vmatprep.mubr.f32.mxu0 0.0
  %1102 = vmatmul.mubr.f32.gmra.mrb[0].mxu0 %v1030
  %v1103 = vpop.f32.mrb[0].mxu0
  %v1104 = vadd.f32 0.0, %v1103
  %v1105 = vpop.f32.mrb[0].mxu0
  %1106 = vdwg.mxu0
  %v1108 = vsel %vm872, %v867, 0
  %v1110 = vsel %vm872, %v491, 0
  %v1113 = vsel %vm872, %v496, 0
  %1115 = vmatprep.subr.mxu0 0.0
  %1116 = vmatpush1.xpose.msra.mxu0 %v1110
  %1117 = vmatprep.subr.mxu0 0.0
  %1118 = vmatpush1.xpose.msra.mxu0 %v1113
  %1119 = vmatprep.subr.mxu0 0.0
  %1120 = vmatpush1.xpose.msra.mxu0 0.0
  %1121 = vmatprep.subr.mxu0 0.0
  %1122 = vmatpush1.xpose.msra.mxu0 0.0
  %1123 = vmatprep.subr.mxu0 0.0
  %1124 = vmatpush1.xpose.msra.mxu0 0.0
  %1125 = vmatprep.subr.mxu0 0.0
  %1126 = vmatpush1.xpose.msra.mxu0 0.0
  %1127 = vmatprep.subr.mxu0 0.0
  %1128 = vmatpush1.xpose.msra.mxu0 0.0
  %1129 = vmatprep.subr.mxu0 0.0
  %1130 = vmatpush1.xpose.msra.mxu0 0.0
  %1131 = vmatprep.subr.mxu0 0.0
  %1132 = vmatpush1.xpose.msra.mxu0 0.0
  %1133 = vmatprep.subr.mxu0 0.0
  %1134 = vmatpush1.xpose.msra.mxu0 0.0
  %1135 = vmatprep.subr.mxu0 0.0
  %1136 = vmatpush1.xpose.msra.mxu0 0.0
  %1137 = vmatprep.subr.mxu0 0.0
  %1138 = vmatpush1.xpose.msra.mxu0 0.0
  %1139 = vmatprep.subr.mxu0 0.0
  %1140 = vmatpush1.xpose.msra.mxu0 0.0
  %1141 = vmatprep.subr.mxu0 0.0
  %1142 = vmatpush1.xpose.msra.mxu0 0.0
  %1143 = vmatprep.subr.mxu0 0.0
  %1144 = vmatpush1.xpose.msra.mxu0 0.0
  %1145 = vmatprep.subr.mxu0 0.0
  %1146 = vmatpush1.xpose.msra.mxu0 0.0
  %1147 = vmatprep.subr.mxu0 0.0
  %1148 = vmatpush1.xpose.msra.mxu0 0.0
  %1149 = vmatprep.subr.mxu0 0.0
  %1150 = vmatpush1.xpose.msra.mxu0 0.0
  %1151 = vmatprep.subr.mxu0 0.0
  %1152 = vmatpush1.xpose.msra.mxu0 0.0
  %1153 = vmatprep.subr.mxu0 0.0
  %1154 = vmatpush1.xpose.msra.mxu0 0.0
  %1155 = vmatprep.subr.mxu0 0.0
  %1156 = vmatpush1.xpose.msra.mxu0 0.0
  %1157 = vmatprep.subr.mxu0 0.0
  %1158 = vmatpush1.xpose.msra.mxu0 0.0
  %1159 = vmatprep.subr.mxu0 0.0
  %1160 = vmatpush1.xpose.msra.mxu0 0.0
  %1161 = vmatprep.subr.mxu0 0.0
  %1162 = vmatpush1.xpose.msra.mxu0 0.0
  %1163 = vmatprep.subr.mxu0 0.0
  %1164 = vmatpush1.xpose.msra.mxu0 0.0
  %1165 = vmatprep.subr.mxu0 0.0
  %1166 = vmatpush1.xpose.msra.mxu0 0.0
  %1167 = vmatprep.subr.mxu0 0.0
  %1168 = vmatpush1.xpose.msra.mxu0 0.0
  %1169 = vmatprep.subr.mxu0 0.0
  %1170 = vmatpush1.xpose.msra.mxu0 0.0
  %1171 = vmatprep.subr.mxu0 0.0
  %1172 = vmatpush1.xpose.msra.mxu0 0.0
  %1173 = vmatprep.subr.mxu0 0.0
  %1174 = vmatpush1.xpose.msra.mxu0 0.0
  %1175 = vmatprep.subr.mxu0 0.0
  %1176 = vmatpush1.xpose.msra.mxu0 0.0
  %1177 = vmatprep.subr.mxu0 0.0
  %1178 = vmatpush1.xpose.msra.mxu0 0.0
  %1179 = vmatprep.mubr.f32.mxu0 0.0
  %1180 = vmatmul.mubr.f32.gmra.mrb[0].mxu0 %v1108
  %v1181 = vpop.f32.mrb[0].mxu0
  %v1182 = vadd.f32 0.0, %v1181
  %v1183 = vpop.f32.mrb[0].mxu0
  %1184 = vdwg.mxu0
  %v1186 = vsel %vm872, %v868, 0
  %v1188 = vsel %vm872, %v572, 0
  %v1191 = vsel %vm872, %v577, 0
  %1193 = vmatprep.subr.mxu0 0.0
  %1194 = vmatpush1.xpose.msra.mxu0 %v1188
  %1195 = vmatprep.subr.mxu0 0.0
  %1196 = vmatpush1.xpose.msra.mxu0 %v1191
  %1197 = vmatprep.subr.mxu0 0.0
  %1198 = vmatpush1.xpose.msra.mxu0 0.0
  %1199 = vmatprep.subr.mxu0 0.0
  %1200 = vmatpush1.xpose.msra.mxu0 0.0
  %1201 = vmatprep.subr.mxu0 0.0
  %1202 = vmatpush1.xpose.msra.mxu0 0.0
  %1203 = vmatprep.subr.mxu0 0.0
  %1204 = vmatpush1.xpose.msra.mxu0 0.0
  %1205 = vmatprep.subr.mxu0 0.0
  %1206 = vmatpush1.xpose.msra.mxu0 0.0
  %1207 = vmatprep.subr.mxu0 0.0
  %1208 = vmatpush1.xpose.msra.mxu0 0.0
  %1209 = vmatprep.subr.mxu0 0.0
  %1210 = vmatpush1.xpose.msra.mxu0 0.0
  %1211 = vmatprep.subr.mxu0 0.0
  %1212 = vmatpush1.xpose.msra.mxu0 0.0
  %1213 = vmatprep.subr.mxu0 0.0
  %1214 = vmatpush1.xpose.msra.mxu0 0.0
  %1215 = vmatprep.subr.mxu0 0.0
  %1216 = vmatpush1.xpose.msra.mxu0 0.0
  %1217 = vmatprep.subr.mxu0 0.0
  %1218 = vmatpush1.xpose.msra.mxu0 0.0
  %1219 = vmatprep.subr.mxu0 0.0
  %1220 = vmatpush1.xpose.msra.mxu0 0.0
  %1221 = vmatprep.subr.mxu0 0.0
  %1222 = vmatpush1.xpose.msra.mxu0 0.0
  %1223 = vmatprep.subr.mxu0 0.0
  %1224 = vmatpush1.xpose.msra.mxu0 0.0
  %1225 = vmatprep.subr.mxu0 0.0
  %1226 = vmatpush1.xpose.msra.mxu0 0.0
  %1227 = vmatprep.subr.mxu0 0.0
  %1228 = vmatpush1.xpose.msra.mxu0 0.0
  %1229 = vmatprep.subr.mxu0 0.0
  %1230 = vmatpush1.xpose.msra.mxu0 0.0
  %1231 = vmatprep.subr.mxu0 0.0
  %1232 = vmatpush1.xpose.msra.mxu0 0.0
  %1233 = vmatprep.subr.mxu0 0.0
  %1234 = vmatpush1.xpose.msra.mxu0 0.0
  %1235 = vmatprep.subr.mxu0 0.0
  %1236 = vmatpush1.xpose.msra.mxu0 0.0
  %1237 = vmatprep.subr.mxu0 0.0
  %1238 = vmatpush1.xpose.msra.mxu0 0.0
  %1239 = vmatprep.subr.mxu0 0.0
  %1240 = vmatpush1.xpose.msra.mxu0 0.0
  %1241 = vmatprep.subr.mxu0 0.0
  %1242 = vmatpush1.xpose.msra.mxu0 0.0
  %1243 = vmatprep.subr.mxu0 0.0
  %1244 = vmatpush1.xpose.msra.mxu0 0.0
  %1245 = vmatprep.subr.mxu0 0.0
  %1246 = vmatpush1.xpose.msra.mxu0 0.0
  %1247 = vmatprep.subr.mxu0 0.0
  %1248 = vmatpush1.xpose.msra.mxu0 0.0
  %1249 = vmatprep.subr.mxu0 0.0
  %1250 = vmatpush1.xpose.msra.mxu0 0.0
  %1251 = vmatprep.subr.mxu0 0.0
  %1252 = vmatpush1.xpose.msra.mxu0 0.0
  %1253 = vmatprep.subr.mxu0 0.0
  %1254 = vmatpush1.xpose.msra.mxu0 0.0
  %1255 = vmatprep.subr.mxu0 0.0
  %1256 = vmatpush1.xpose.msra.mxu0 0.0
  %1257 = vmatprep.mubr.f32.mxu0 0.0
  %1258 = vmatmul.mubr.f32.gmra.mrb[0].mxu0 %v1186
  %v1259 = vpop.f32.mrb[0].mxu0
  %v1260 = vadd.f32 0.0, %v1259
  %v1261 = vpop.f32.mrb[0].mxu0
  %1262 = vdwg.mxu0
  %v1264 = vsel %vm872, %v869, 0
  %v1266 = vsel %vm872, %v653, 0
  %v1269 = vsel %vm872, %v658, 0
  %1271 = vmatprep.subr.mxu0 0.0
  %1272 = vmatpush1.xpose.msra.mxu0 %v1266
  %1273 = vmatprep.subr.mxu0 0.0
  %1274 = vmatpush1.xpose.msra.mxu0 %v1269
  %1275 = vmatprep.subr.mxu0 0.0
  %1276 = vmatpush1.xpose.msra.mxu0 0.0
  %1277 = vmatprep.subr.mxu0 0.0
  %1278 = vmatpush1.xpose.msra.mxu0 0.0
  %1279 = vmatprep.subr.mxu0 0.0
  %1280 = vmatpush1.xpose.msra.mxu0 0.0
  %1281 = vmatprep.subr.mxu0 0.0
  %1282 = vmatpush1.xpose.msra.mxu0 0.0
  %1283 = vmatprep.subr.mxu0 0.0
  %1284 = vmatpush1.xpose.msra.mxu0 0.0
  %1285 = vmatprep.subr.mxu0 0.0
  %1286 = vmatpush1.xpose.msra.mxu0 0.0
  %1287 = vmatprep.subr.mxu0 0.0
  %1288 = vmatpush1.xpose.msra.mxu0 0.0
  %1289 = vmatprep.subr.mxu0 0.0
  %1290 = vmatpush1.xpose.msra.mxu0 0.0
  %1291 = vmatprep.subr.mxu0 0.0
  %1292 = vmatpush1.xpose.msra.mxu0 0.0
  %1293 = vmatprep.subr.mxu0 0.0
  %1294 = vmatpush1.xpose.msra.mxu0 0.0
  %1295 = vmatprep.subr.mxu0 0.0
  %1296 = vmatpush1.xpose.msra.mxu0 0.0
  %1297 = vmatprep.subr.mxu0 0.0
  %1298 = vmatpush1.xpose.msra.mxu0 0.0
  %1299 = vmatprep.subr.mxu0 0.0
  %1300 = vmatpush1.xpose.msra.mxu0 0.0
  %1301 = vmatprep.subr.mxu0 0.0
  %1302 = vmatpush1.xpose.msra.mxu0 0.0
  %1303 = vmatprep.subr.mxu0 0.0
  %1304 = vmatpush1.xpose.msra.mxu0 0.0
  %1305 = vmatprep.subr.mxu0 0.0
  %1306 = vmatpush1.xpose.msra.mxu0 0.0
  %1307 = vmatprep.subr.mxu0 0.0
  %1308 = vmatpush1.xpose.msra.mxu0 0.0
  %1309 = vmatprep.subr.mxu0 0.0
  %1310 = vmatpush1.xpose.msra.mxu0 0.0
  %1311 = vmatprep.subr.mxu0 0.0
  %1312 = vmatpush1.xpose.msra.mxu0 0.0
  %1313 = vmatprep.subr.mxu0 0.0
  %1314 = vmatpush1.xpose.msra.mxu0 0.0
  %1315 = vmatprep.subr.mxu0 0.0
  %1316 = vmatpush1.xpose.msra.mxu0 0.0
  %1317 = vmatprep.subr.mxu0 0.0
  %1318 = vmatpush1.xpose.msra.mxu0 0.0
  %1319 = vmatprep.subr.mxu0 0.0
  %1320 = vmatpush1.xpose.msra.mxu0 0.0
  %1321 = vmatprep.subr.mxu0 0.0
  %1322 = vmatpush1.xpose.msra.mxu0 0.0
  %1323 = vmatprep.subr.mxu0 0.0
  %1324 = vmatpush1.xpose.msra.mxu0 0.0
  %1325 = vmatprep.subr.mxu0 0.0
  %1326 = vmatpush1.xpose.msra.mxu0 0.0
  %1327 = vmatprep.subr.mxu0 0.0
  %1328 = vmatpush1.xpose.msra.mxu0 0.0
  %1329 = vmatprep.subr.mxu0 0.0
  %1330 = vmatpush1.xpose.msra.mxu0 0.0
  %1331 = vmatprep.subr.mxu0 0.0
  %1332 = vmatpush1.xpose.msra.mxu0 0.0
  %1333 = vmatprep.subr.mxu0 0.0
  %1334 = vmatpush1.xpose.msra.mxu0 0.0
  %1335 = vmatprep.mubr.f32.mxu0 0.0
  %1336 = vmatmul.mubr.f32.gmra.mrb[0].mxu0 %v1264
  %v1337 = vpop.f32.mrb[0].mxu0
  %v1338 = vadd.f32 0.0, %v1337
  %v1339 = vpop.f32.mrb[0].mxu0
  %1340 = vdwg.mxu0
  %v1342 = vsel %vm872, %v870, 0
  %v1344 = vsel %vm872, %v734, 0
  %v1347 = vsel %vm872, %v739, 0
  %1349 = vmatprep.subr.mxu0 0.0
  %1350 = vmatpush1.xpose.msra.mxu0 %v1344
  %1351 = vmatprep.subr.mxu0 0.0
  %1352 = vmatpush1.xpose.msra.mxu0 %v1347
  %1353 = vmatprep.subr.mxu0 0.0
  %1354 = vmatpush1.xpose.msra.mxu0 0.0
  %1355 = vmatprep.subr.mxu0 0.0
  %1356 = vmatpush1.xpose.msra.mxu0 0.0
  %1357 = vmatprep.subr.mxu0 0.0
  %1358 = vmatpush1.xpose.msra.mxu0 0.0
  %1359 = vmatprep.subr.mxu0 0.0
  %1360 = vmatpush1.xpose.msra.mxu0 0.0
  %1361 = vmatprep.subr.mxu0 0.0
  %1362 = vmatpush1.xpose.msra.mxu0 0.0
  %1363 = vmatprep.subr.mxu0 0.0
  %1364 = vmatpush1.xpose.msra.mxu0 0.0
  %1365 = vmatprep.subr.mxu0 0.0
  %1366 = vmatpush1.xpose.msra.mxu0 0.0
  %1367 = vmatprep.subr.mxu0 0.0
  %1368 = vmatpush1.xpose.msra.mxu0 0.0
  %1369 = vmatprep.subr.mxu0 0.0
  %1370 = vmatpush1.xpose.msra.mxu0 0.0
  %1371 = vmatprep.subr.mxu0 0.0
  %1372 = vmatpush1.xpose.msra.mxu0 0.0
  %1373 = vmatprep.subr.mxu0 0.0
  %1374 = vmatpush1.xpose.msra.mxu0 0.0
  %1375 = vmatprep.subr.mxu0 0.0
  %1376 = vmatpush1.xpose.msra.mxu0 0.0
  %1377 = vmatprep.subr.mxu0 0.0
  %1378 = vmatpush1.xpose.msra.mxu0 0.0
  %1379 = vmatprep.subr.mxu0 0.0
  %1380 = vmatpush1.xpose.msra.mxu0 0.0
  %1381 = vmatprep.subr.mxu0 0.0
  %1382 = vmatpush1.xpose.msra.mxu0 0.0
  %1383 = vmatprep.subr.mxu0 0.0
  %1384 = vmatpush1.xpose.msra.mxu0 0.0
  %1385 = vmatprep.subr.mxu0 0.0
  %1386 = vmatpush1.xpose.msra.mxu0 0.0
  %1387 = vmatprep.subr.mxu0 0.0
  %1388 = vmatpush1.xpose.msra.mxu0 0.0
  %1389 = vmatprep.subr.mxu0 0.0
  %1390 = vmatpush1.xpose.msra.mxu0 0.0
  %1391 = vmatprep.subr.mxu0 0.0
  %1392 = vmatpush1.xpose.msra.mxu0 0.0
  %1393 = vmatprep.subr.mxu0 0.0
  %1394 = vmatpush1.xpose.msra.mxu0 0.0
  %1395 = vmatprep.subr.mxu0 0.0
  %1396 = vmatpush1.xpose.msra.mxu0 0.0
  %1397 = vmatprep.subr.mxu0 0.0
  %1398 = vmatpush1.xpose.msra.mxu0 0.0
  %1399 = vmatprep.subr.mxu0 0.0
  %1400 = vmatpush1.xpose.msra.mxu0 0.0
  %1401 = vmatprep.subr.mxu0 0.0
  %1402 = vmatpush1.xpose.msra.mxu0 0.0
  %1403 = vmatprep.subr.mxu0 0.0
  %1404 = vmatpush1.xpose.msra.mxu0 0.0
  %1405 = vmatprep.subr.mxu0 0.0
  %1406 = vmatpush1.xpose.msra.mxu0 0.0
  %1407 = vmatprep.subr.mxu0 0.0
  %1408 = vmatpush1.xpose.msra.mxu0 0.0
  %1409 = vmatprep.subr.mxu0 0.0
  %1410 = vmatpush1.xpose.msra.mxu0 0.0
  %1411 = vmatprep.subr.mxu0 0.0
  %1412 = vmatpush1.xpose.msra.mxu0 0.0
  %1413 = vmatprep.mubr.f32.mxu0 0.0
  %1414 = vmatmul.mubr.f32.gmra.mrb[0].mxu0 %v1342
  %v1415 = vpop.f32.mrb[0].mxu0
  %v1416 = vadd.f32 0.0, %v1415
  %v1417 = vpop.f32.mrb[0].mxu0
  %1418 = vdwg.mxu0
  %v1420 = vsel %vm872, %v871, 0
  %v1422 = vsel %vm872, %v815, 0
  %v1425 = vsel %vm872, %v820, 0
  %1427 = vmatprep.subr.mxu0 0.0
  %1428 = vmatpush1.xpose.msra.mxu0 %v1422
  %1429 = vmatprep.subr.mxu0 0.0
  %1430 = vmatpush1.xpose.msra.mxu0 %v1425
  %1431 = vmatprep.subr.mxu0 0.0
  %1432 = vmatpush1.xpose.msra.mxu0 0.0
  %1433 = vmatprep.subr.mxu0 0.0
  %1434 = vmatpush1.xpose.msra.mxu0 0.0
  %1435 = vmatprep.subr.mxu0 0.0
  %1436 = vmatpush1.xpose.msra.mxu0 0.0
  %1437 = vmatprep.subr.mxu0 0.0
  %1438 = vmatpush1.xpose.msra.mxu0 0.0
  %1439 = vmatprep.subr.mxu0 0.0
  %1440 = vmatpush1.xpose.msra.mxu0 0.0
  %1441 = vmatprep.subr.mxu0 0.0
  %1442 = vmatpush1.xpose.msra.mxu0 0.0
  %1443 = vmatprep.subr.mxu0 0.0
  %1444 = vmatpush1.xpose.msra.mxu0 0.0
  %1445 = vmatprep.subr.mxu0 0.0
  %1446 = vmatpush1.xpose.msra.mxu0 0.0
  %1447 = vmatprep.subr.mxu0 0.0
  %1448 = vmatpush1.xpose.msra.mxu0 0.0
  %1449 = vmatprep.subr.mxu0 0.0
  %1450 = vmatpush1.xpose.msra.mxu0 0.0
  %1451 = vmatprep.subr.mxu0 0.0
  %1452 = vmatpush1.xpose.msra.mxu0 0.0
  %1453 = vmatprep.subr.mxu0 0.0
  %1454 = vmatpush1.xpose.msra.mxu0 0.0
  %1455 = vmatprep.subr.mxu0 0.0
  %1456 = vmatpush1.xpose.msra.mxu0 0.0
  %1457 = vmatprep.subr.mxu0 0.0
  %1458 = vmatpush1.xpose.msra.mxu0 0.0
  %1459 = vmatprep.subr.mxu0 0.0
  %1460 = vmatpush1.xpose.msra.mxu0 0.0
  %1461 = vmatprep.subr.mxu0 0.0
  %1462 = vmatpush1.xpose.msra.mxu0 0.0
  %1463 = vmatprep.subr.mxu0 0.0
  %1464 = vmatpush1.xpose.msra.mxu0 0.0
  %1465 = vmatprep.subr.mxu0 0.0
  %1466 = vmatpush1.xpose.msra.mxu0 0.0
  %1467 = vmatprep.subr.mxu0 0.0
  %1468 = vmatpush1.xpose.msra.mxu0 0.0
  %1469 = vmatprep.subr.mxu0 0.0
  %1470 = vmatpush1.xpose.msra.mxu0 0.0
  %1471 = vmatprep.subr.mxu0 0.0
  %1472 = vmatpush1.xpose.msra.mxu0 0.0
  %1473 = vmatprep.subr.mxu0 0.0
  %1474 = vmatpush1.xpose.msra.mxu0 0.0
  %1475 = vmatprep.subr.mxu0 0.0
  %1476 = vmatpush1.xpose.msra.mxu0 0.0
  %1477 = vmatprep.subr.mxu0 0.0
  %1478 = vmatpush1.xpose.msra.mxu0 0.0
  %1479 = vmatprep.subr.mxu0 0.0
  %1480 = vmatpush1.xpose.msra.mxu0 0.0
  %1481 = vmatprep.subr.mxu0 0.0
  %1482 = vmatpush1.xpose.msra.mxu0 0.0
  %1483 = vmatprep.subr.mxu0 0.0
  %1484 = vmatpush1.xpose.msra.mxu0 0.0
  %1485 = vmatprep.subr.mxu0 0.0
  %1486 = vmatpush1.xpose.msra.mxu0 0.0
  %1487 = vmatprep.subr.mxu0 0.0
  %1488 = vmatpush1.xpose.msra.mxu0 0.0
  %1489 = vmatprep.subr.mxu0 0.0
  %1490 = vmatpush1.xpose.msra.mxu0 0.0
  %1491 = vmatprep.mubr.f32.mxu0 0.0
  %1492 = vmatmul.mubr.f32.gmra.mrb[0].mxu0 %v1420
  %v1493 = vpop.f32.mrb[0].mxu0
  %v1494 = vadd.f32 0.0, %v1493
  %v1495 = vpop.f32.mrb[0].mxu0
  %1496 = vdwg.mxu0
  %v1497 = vld [vmem:[%s2] sm:$0xff]
  %v1498 = vcombine.high %v1497, %v1497
  %v1500 = vunpack.c.l.s4 1966171168
  %v1501 = vunpack.c.0.s8 %v1500
  %v1502 = vlaneseq
  %v1503 = vshrl.u32 %v1502, 7
  %v1504 = vsub.s32 %v1501, %v1503
  %v1505 = vrot.slane %v1497, %v1504
  %v1507 = vunpack.c.l.s4 1966171168
  %v1508 = vunpack.c.0.s8 %v1507
  %v1509 = vlaneseq
  %v1510 = vshrl.u32 %v1509, 7
  %v1511 = vsub.s32 %v1508, %v1510
  %v1512 = vrot.slane %v1498, %v1511
  %v1513 = vcombine.high %v1505, %v1505
  %v1514 = vcombine.high %v1512, %v1512
  %v1516 = vunpack.c.l.s4 1966171168
  %v1517 = vunpack.c.0.s8 %v1516
  %v1518 = vlaneseq
  %v1519 = vshrl.u32 %v1518, 7
  %v1520 = vsub.s32 %v1517, %v1519
  %v1521 = vrot.slane %v1505, %v1520
  %v1523 = vunpack.c.l.s4 1966171168
  %v1524 = vunpack.c.0.s8 %v1523
  %v1525 = vlaneseq
  %v1526 = vshrl.u32 %v1525, 7
  %v1527 = vsub.s32 %v1524, %v1526
  %v1528 = vrot.slane %v1512, %v1527
  %v1530 = vunpack.c.l.s4 1966171168
  %v1531 = vunpack.c.0.s8 %v1530
  %v1532 = vlaneseq
  %v1533 = vshrl.u32 %v1532, 7
  %v1534 = vsub.s32 %v1531, %v1533
  %v1535 = vrot.slane %v1513, %v1534
  %v1537 = vunpack.c.l.s4 1966171168
  %v1538 = vunpack.c.0.s8 %v1537
  %v1539 = vlaneseq
  %v1540 = vshrl.u32 %v1539, 7
  %v1541 = vsub.s32 %v1538, %v1540
  %v1542 = vrot.slane %v1514, %v1541
  %v1543 = vcombine.high %v1521, %v1521
  %v1544 = vcombine.high %v1528, %v1528
  %v1545 = vcombine.high %v1535, %v1535
  %v1546 = vcombine.high %v1542, %v1542
  %v1547 = vlaneseq
  %v1548 = vshrl.u32 %v1547, 7
  %vm1549 = vcmp.eq.s32.totalorder %v1548, 0
  %vm1550 = vcmp.lt.s32.totalorder %v1521, 6
  %v1551 = vsel %vm1550, %v1521, 6
  %vm1552 = vcmp.lt.s32.totalorder %v1535, 6
  %v1553 = vsel %vm1552, %v1535, 6
  %vm1554 = vcmp.lt.s32.totalorder %v1543, 6
  %v1555 = vsel %vm1554, %v1543, 6
  %vm1556 = vcmp.lt.s32.totalorder %v1545, 6
  %v1557 = vsel %vm1556, %v1545, 6
  %vm1558 = vcmp.lt.s32.totalorder %v1528, 6
  %v1559 = vsel %vm1558, %v1528, 6
  %vm1560 = vcmp.lt.s32.totalorder %v1542, 6
  %v1561 = vsel %vm1560, %v1542, 6
  %vm1562 = vcmp.lt.s32.totalorder %v1544, 6
  %v1563 = vsel %vm1562, %v1544, 6
  %vm1564 = vcmp.lt.s32.totalorder %v1546, 6
  %v1565 = vsel %vm1564, %v1546, 6
  %v1566 = vlaneseq
  %v1567 = vshrl.u32 %v1566, 7
  %v1568 = vsub.s32 0, %v1567
  %v1569 = vrot.slane %v1551, %v1568
  %v1570 = vlaneseq
  %v1571 = vshrl.u32 %v1570, 7
  %v1572 = vsub.s32 0, %v1571
  %v1573 = vrot.slane %v1553, %v1572
  %v1574 = vlaneseq
  %v1575 = vshrl.u32 %v1574, 7
  %v1576 = vsub.s32 0, %v1575
  %v1577 = vrot.slane %v1555, %v1576
  %v1578 = vlaneseq
  %v1579 = vshrl.u32 %v1578, 7
  %v1580 = vsub.s32 0, %v1579
  %v1581 = vrot.slane %v1557, %v1580
  %v1582 = vlaneseq
  %v1583 = vshrl.u32 %v1582, 7
  %v1584 = vsub.s32 0, %v1583
  %v1585 = vrot.slane %v1559, %v1584
  %v1586 = vlaneseq
  %v1587 = vshrl.u32 %v1586, 7
  %v1588 = vsub.s32 0, %v1587
  %v1589 = vrot.slane %v1561, %v1588
  %v1590 = vlaneseq
  %v1591 = vshrl.u32 %v1590, 7
  %v1592 = vsub.s32 0, %v1591
  %v1593 = vrot.slane %v1563, %v1592
  %v1594 = vlaneseq
  %v1595 = vshrl.u32 %v1594, 7
  %v1596 = vsub.s32 0, %v1595
  %v1597 = vrot.slane %v1565, %v1596
  %1598 = vset.pattern.permute.xlu0 0
  %1599 = vperm.xlu0 %1598, %v1569
  %v1600 = vpop.permute.xlu0 %1599
  %1601 = vset.pattern.permute.xlu0 0
  %1602 = vperm.xlu0 %1601, %v1573
  %v1603 = vpop.permute.xlu0 %1602
  %1604 = vset.pattern.permute.xlu0 0
  %1605 = vperm.xlu0 %1604, %v1577
  %v1606 = vpop.permute.xlu0 %1605
  %1607 = vset.pattern.permute.xlu0 0
  %1608 = vperm.xlu0 %1607, %v1581
  %v1609 = vpop.permute.xlu0 %1608
  %1610 = vset.pattern.permute.xlu0 0
  %1611 = vperm.xlu0 %1610, %v1585
  %v1612 = vpop.permute.xlu0 %1611
  %1613 = vset.pattern.permute.xlu0 0
  %1614 = vperm.xlu0 %1613, %v1589
  %v1615 = vpop.permute.xlu0 %1614
  %1616 = vset.pattern.permute.xlu0 0
  %1617 = vperm.xlu0 %1616, %v1593
  %v1618 = vpop.permute.xlu0 %1617
  %1619 = vset.pattern.permute.xlu0 0
  %1620 = vperm.xlu0 %1619, %v1597
  %v1621 = vpop.permute.xlu0 %1620
  %vm1622 = vcmp.lt.s32.totalorder %v35, %v1600
  %vm1623 = vcmp.lt.s32.totalorder %v35, %v1603
  %vm1624 = vcmp.lt.s32.totalorder %v35, %v1606
  %vm1625 = vcmp.lt.s32.totalorder %v35, %v1609
  %vm1626 = vcmp.lt.s32.totalorder %v35, %v1612
  %vm1627 = vcmp.lt.s32.totalorder %v35, %v1615
  %vm1628 = vcmp.lt.s32.totalorder %v35, %v1618
  %vm1629 = vcmp.lt.s32.totalorder %v35, %v1621
  %vm1630 = vmand %vm1549, %vm1622
  %vm1631 = vmand %vm1549, %vm1623
  %vm1632 = vmand %vm1549, %vm1624
  %vm1633 = vmand %vm1549, %vm1625
  %vm1634 = vmand %vm1549, %vm1626
  %vm1635 = vmand %vm1549, %vm1627
  %vm1636 = vmand %vm1549, %vm1628
  %vm1637 = vmand %vm1549, %vm1629
  %vm1638 = vcmp.eq.s32.totalorder %v1548, 1
  %vm1639 = vcmp.ge.s32.totalorder %v35, 6
  %vm1640 = vmand %vm1638, %vm1639
  %v1641 = vadd.s32 %v1521, 6
  %v1642 = vadd.s32 %v1535, 6
  %v1643 = vadd.s32 %v1543, 6
  %v1644 = vadd.s32 %v1545, 6
  %v1645 = vadd.s32 %v1528, 6
  %v1646 = vadd.s32 %v1542, 6
  %v1647 = vadd.s32 %v1544, 6
  %v1648 = vadd.s32 %v1546, 6
  %v1649 = vlaneseq
  %v1650 = vshrl.u32 %v1649, 7
  %v1651 = vsub.s32 0, %v1650
  %v1652 = vrot.slane %v1641, %v1651
  %v1653 = vlaneseq
  %v1654 = vshrl.u32 %v1653, 7
  %v1655 = vsub.s32 0, %v1654
  %v1656 = vrot.slane %v1642, %v1655
  %v1657 = vlaneseq
  %v1658 = vshrl.u32 %v1657, 7
  %v1659 = vsub.s32 0, %v1658
  %v1660 = vrot.slane %v1643, %v1659
  %v1661 = vlaneseq
  %v1662 = vshrl.u32 %v1661, 7
  %v1663 = vsub.s32 0, %v1662
  %v1664 = vrot.slane %v1644, %v1663
  %v1665 = vlaneseq
  %v1666 = vshrl.u32 %v1665, 7
  %v1667 = vsub.s32 0, %v1666
  %v1668 = vrot.slane %v1645, %v1667
  %v1669 = vlaneseq
  %v1670 = vshrl.u32 %v1669, 7
  %v1671 = vsub.s32 0, %v1670
  %v1672 = vrot.slane %v1646, %v1671
  %v1673 = vlaneseq
  %v1674 = vshrl.u32 %v1673, 7
  %v1675 = vsub.s32 0, %v1674
  %v1676 = vrot.slane %v1647, %v1675
  %v1677 = vlaneseq
  %v1678 = vshrl.u32 %v1677, 7
  %v1679 = vsub.s32 0, %v1678
  %v1680 = vrot.slane %v1648, %v1679
  %1681 = vset.pattern.permute.xlu0 1
  %1682 = vperm.xlu0 %1681, %v1652
  %v1683 = vpop.permute.xlu0 %1682
  %1684 = vset.pattern.permute.xlu0 1
  %1685 = vperm.xlu0 %1684, %v1656
  %v1686 = vpop.permute.xlu0 %1685
  %1687 = vset.pattern.permute.xlu0 1
  %1688 = vperm.xlu0 %1687, %v1660
  %v1689 = vpop.permute.xlu0 %1688
  %1690 = vset.pattern.permute.xlu0 1
  %1691 = vperm.xlu0 %1690, %v1664
  %v1692 = vpop.permute.xlu0 %1691
  %1693 = vset.pattern.permute.xlu0 1
  %1694 = vperm.xlu0 %1693, %v1668
  %v1695 = vpop.permute.xlu0 %1694
  %1696 = vset.pattern.permute.xlu0 1
  %1697 = vperm.xlu0 %1696, %v1672
  %v1698 = vpop.permute.xlu0 %1697
  %1699 = vset.pattern.permute.xlu0 1
  %1700 = vperm.xlu0 %1699, %v1676
  %v1701 = vpop.permute.xlu0 %1700
  %1702 = vset.pattern.permute.xlu0 1
  %1703 = vperm.xlu0 %1702, %v1680
  %v1704 = vpop.permute.xlu0 %1703
  %vm1705 = vcmp.lt.s32.totalorder %v35, %v1683
  %vm1706 = vcmp.lt.s32.totalorder %v35, %v1686
  %vm1707 = vcmp.lt.s32.totalorder %v35, %v1689
  %vm1708 = vcmp.lt.s32.totalorder %v35, %v1692
  %vm1709 = vcmp.lt.s32.totalorder %v35, %v1695
  %vm1710 = vcmp.lt.s32.totalorder %v35, %v1698
  %vm1711 = vcmp.lt.s32.totalorder %v35, %v1701
  %vm1712 = vcmp.lt.s32.totalorder %v35, %v1704
  %vm1713 = vmand %vm1640, %vm1705
  %vm1714 = vmand %vm1640, %vm1706
  %vm1715 = vmand %vm1640, %vm1707
  %vm1716 = vmand %vm1640, %vm1708
  %vm1717 = vmand %vm1640, %vm1709
  %vm1718 = vmand %vm1640, %vm1710
  %vm1719 = vmand %vm1640, %vm1711
  %vm1720 = vmand %vm1640, %vm1712
  %vm1721 = vmor %vm1630, %vm1713
  %vm1722 = vmor %vm1631, %vm1714
  %vm1723 = vmor %vm1632, %vm1715
  %vm1724 = vmor %vm1633, %vm1716
  %vm1725 = vmor %vm1634, %vm1717
  %vm1726 = vmor %vm1635, %vm1718
  %vm1727 = vmor %vm1636, %vm1719
  %vm1728 = vmor %vm1637, %vm1720
  %v1729 = vsel %vm1721, %v948, -1e+30
  %v1730 = vsel %vm1722, %v1026, -1e+30
  %v1731 = vsel %vm1723, %v1104, -1e+30
  %v1732 = vsel %vm1724, %v1182, -1e+30
  %v1733 = vsel %vm1725, %v1260, -1e+30
  %v1734 = vsel %vm1726, %v1338, -1e+30
  %v1735 = vsel %vm1727, %v1416, -1e+30
  %v1736 = vsel %vm1728, %v1494, -1e+30
  %vm1737 = vcmask 107520
  %v1738 = vsel %vm1737, %v1729, -inf
  %1739 = vmax.xlane.f32.xlu0 %v1738
  %v1740 = vpop.xlane.xlu0 %1739
  %v1741 = vsel %vm1737, %v1730, -inf
  %1742 = vmax.xlane.f32.xlu0 %v1741
  %v1743 = vpop.xlane.xlu0 %1742
  %v1744 = vsel %vm1737, %v1731, -inf
  %1745 = vmax.xlane.f32.xlu0 %v1744
  %v1746 = vpop.xlane.xlu0 %1745
  %v1747 = vsel %vm1737, %v1732, -inf
  %1748 = vmax.xlane.f32.xlu0 %v1747
  %v1749 = vpop.xlane.xlu0 %1748
  %v1750 = vsel %vm1737, %v1733, -inf
  %1751 = vmax.xlane.f32.xlu0 %v1750
  %v1752 = vpop.xlane.xlu0 %1751
  %v1753 = vsel %vm1737, %v1734, -inf
  %1754 = vmax.xlane.f32.xlu0 %v1753
  %v1755 = vpop.xlane.xlu0 %1754
  %v1756 = vsel %vm1737, %v1735, -inf
  %1757 = vmax.xlane.f32.xlu0 %v1756
  %v1758 = vpop.xlane.xlu0 %1757
  %v1759 = vsel %vm1737, %v1736, -inf
  %1760 = vmax.xlane.f32.xlu0 %v1759
  %v1761 = vpop.xlane.xlu0 %1760
  %v1762 = vsub.f32 %v1729, %v1740
  %v1763 = vsub.f32 %v1730, %v1743
  %v1764 = vsub.f32 %v1731, %v1746
  %v1765 = vsub.f32 %v1732, %v1749
  %v1766 = vsub.f32 %v1733, %v1752
  %v1767 = vsub.f32 %v1734, %v1755
  %v1768 = vsub.f32 %v1735, %v1758
  %v1769 = vsub.f32 %v1736, %v1761
  %v1770 = vmul.f32 %v1762, 1.442695
  %v1771 = vpow.pop %v1770
  %v1772 = vmul.f32 %v1763, 1.442695
  %v1773 = vpow.pop %v1772
  %v1774 = vmul.f32 %v1764, 1.442695
  %v1775 = vpow.pop %v1774
  %v1776 = vmul.f32 %v1765, 1.442695
  %v1777 = vpow.pop %v1776
  %v1778 = vmul.f32 %v1766, 1.442695
  %v1779 = vpow.pop %v1778
  %v1780 = vmul.f32 %v1767, 1.442695
  %v1781 = vpow.pop %v1780
  %v1782 = vmul.f32 %v1768, 1.442695
  %v1783 = vpow.pop %v1782
  %v1784 = vmul.f32 %v1769, 1.442695
  %v1785 = vpow.pop %v1784
  %v1786 = vsel %vm1721, %v1771, 0.0
  %v1787 = vsel %vm1722, %v1773, 0.0
  %v1788 = vsel %vm1723, %v1775, 0.0
  %v1789 = vsel %vm1724, %v1777, 0.0
  %v1790 = vsel %vm1725, %v1779, 0.0
  %v1791 = vsel %vm1726, %v1781, 0.0
  %v1792 = vsel %vm1727, %v1783, 0.0
  %v1793 = vsel %vm1728, %v1785, 0.0
  %v1794 = vsel %vm1737, %v1786, 0.0
  %1795 = vadd.xlane.f32.xlu0 %v1794
  %v1796 = vpop.xlane.xlu0 %1795
  %v1797 = vsel %vm1737, %v1787, 0.0
  %1798 = vadd.xlane.f32.xlu0 %v1797
  %v1799 = vpop.xlane.xlu0 %1798
  %v1800 = vsel %vm1737, %v1788, 0.0
  %1801 = vadd.xlane.f32.xlu0 %v1800
  %v1802 = vpop.xlane.xlu0 %1801
  %v1803 = vsel %vm1737, %v1789, 0.0
  %1804 = vadd.xlane.f32.xlu0 %v1803
  %v1805 = vpop.xlane.xlu0 %1804
  %v1806 = vsel %vm1737, %v1790, 0.0
  %1807 = vadd.xlane.f32.xlu0 %v1806
  %v1808 = vpop.xlane.xlu0 %1807
  %v1809 = vsel %vm1737, %v1791, 0.0
  %1810 = vadd.xlane.f32.xlu0 %v1809
  %v1811 = vpop.xlane.xlu0 %1810
  %v1812 = vsel %vm1737, %v1792, 0.0
  %1813 = vadd.xlane.f32.xlu0 %v1812
  %v1814 = vpop.xlane.xlu0 %1813
  %v1815 = vsel %vm1737, %v1793, 0.0
  %1816 = vadd.xlane.f32.xlu0 %v1815
  %v1817 = vpop.xlane.xlu0 %1816
  %v1818 = vmax.f32 %v1796, 1e-30
  %v1819 = vmax.f32 %v1799, 1e-30
  %v1820 = vmax.f32 %v1802, 1e-30
  %v1821 = vmax.f32 %v1805, 1e-30
  %v1822 = vmax.f32 %v1808, 1e-30
  %v1823 = vmax.f32 %v1811, 1e-30
  %v1824 = vmax.f32 %v1814, 1e-30
  %v1825 = vmax.f32 %v1817, 1e-30
  %v1826 = vrcp.pop %v1818
  %v1827 = vrcp.pop %v1819
  %v1828 = vrcp.pop %v1820
  %v1829 = vrcp.pop %v1821
  %v1830 = vrcp.pop %v1822
  %v1831 = vrcp.pop %v1823
  %v1832 = vrcp.pop %v1824
  %v1833 = vrcp.pop %v1825
  %v1834 = vmul.f32 %v1786, %v1826
  %v1835 = vmul.f32 %v1787, %v1827
  %v1836 = vmul.f32 %v1788, %v1828
  %v1837 = vmul.f32 %v1789, %v1829
  %v1838 = vmul.f32 %v1790, %v1830
  %v1839 = vmul.f32 %v1791, %v1831
  %v1840 = vmul.f32 %v1792, %v1832
  %v1841 = vmul.f32 %v1793, %v1833
  %vm1842 = vcmask 113664
  %v1844 = vsel %vm1842, %v1834, 0
  %vm1846 = vcmask 1045504
  %v1847 = vsel %vm1846, %v253, 0
  %1849 = vmatprep.subr.mxu0 0.0
  %1850 = vmatpush1.msra.mxu0 %v248
  %1851 = vmatprep.subr.mxu0 0.0
  %1852 = vmatpush1.msra.mxu0 %v1847
  %1853 = vmatprep.subr.mxu0 0.0
  %1854 = vmatpush1.msra.mxu0 0.0
  %1855 = vmatprep.subr.mxu0 0.0
  %1856 = vmatpush1.msra.mxu0 0.0
  %1857 = vmatprep.subr.mxu0 0.0
  %1858 = vmatpush1.msra.mxu0 0.0
  %1859 = vmatprep.subr.mxu0 0.0
  %1860 = vmatpush1.msra.mxu0 0.0
  %1861 = vmatprep.subr.mxu0 0.0
  %1862 = vmatpush1.msra.mxu0 0.0
  %1863 = vmatprep.subr.mxu0 0.0
  %1864 = vmatpush1.msra.mxu0 0.0
  %1865 = vmatprep.subr.mxu0 0.0
  %1866 = vmatpush1.msra.mxu0 0.0
  %1867 = vmatprep.subr.mxu0 0.0
  %1868 = vmatpush1.msra.mxu0 0.0
  %1869 = vmatprep.subr.mxu0 0.0
  %1870 = vmatpush1.msra.mxu0 0.0
  %1871 = vmatprep.subr.mxu0 0.0
  %1872 = vmatpush1.msra.mxu0 0.0
  %1873 = vmatprep.subr.mxu0 0.0
  %1874 = vmatpush1.msra.mxu0 0.0
  %1875 = vmatprep.subr.mxu0 0.0
  %1876 = vmatpush1.msra.mxu0 0.0
  %1877 = vmatprep.subr.mxu0 0.0
  %1878 = vmatpush1.msra.mxu0 0.0
  %1879 = vmatprep.subr.mxu0 0.0
  %1880 = vmatpush1.msra.mxu0 0.0
  %1881 = vmatprep.subr.mxu0 0.0
  %1882 = vmatpush1.msra.mxu0 0.0
  %1883 = vmatprep.subr.mxu0 0.0
  %1884 = vmatpush1.msra.mxu0 0.0
  %1885 = vmatprep.subr.mxu0 0.0
  %1886 = vmatpush1.msra.mxu0 0.0
  %1887 = vmatprep.subr.mxu0 0.0
  %1888 = vmatpush1.msra.mxu0 0.0
  %1889 = vmatprep.subr.mxu0 0.0
  %1890 = vmatpush1.msra.mxu0 0.0
  %1891 = vmatprep.subr.mxu0 0.0
  %1892 = vmatpush1.msra.mxu0 0.0
  %1893 = vmatprep.subr.mxu0 0.0
  %1894 = vmatpush1.msra.mxu0 0.0
  %1895 = vmatprep.subr.mxu0 0.0
  %1896 = vmatpush1.msra.mxu0 0.0
  %1897 = vmatprep.subr.mxu0 0.0
  %1898 = vmatpush1.msra.mxu0 0.0
  %1899 = vmatprep.subr.mxu0 0.0
  %1900 = vmatpush1.msra.mxu0 0.0
  %1901 = vmatprep.subr.mxu0 0.0
  %1902 = vmatpush1.msra.mxu0 0.0
  %1903 = vmatprep.subr.mxu0 0.0
  %1904 = vmatpush1.msra.mxu0 0.0
  %1905 = vmatprep.subr.mxu0 0.0
  %1906 = vmatpush1.msra.mxu0 0.0
  %1907 = vmatprep.subr.mxu0 0.0
  %1908 = vmatpush1.msra.mxu0 0.0
  %1909 = vmatprep.subr.mxu0 0.0
  %1910 = vmatpush1.msra.mxu0 0.0
  %1911 = vmatprep.subr.mxu0 0.0
  %1912 = vmatpush1.msra.mxu0 0.0
  %1913 = vmatprep.mubr.f32.mxu0 0.0
  %1914 = vmatmul.mubr.f32.gmra.mrb[0].mxu0 %v1844
  %v1915 = vpop.f32.mrb[0].mxu0
  %v1916 = vadd.f32 0.0, %v1915
  %v1917 = vpop.f32.mrb[0].mxu0
  %1918 = vdwg.mxu0
  %v1920 = vsel %vm1842, %v1835, 0
  %v1922 = vsel %vm1846, %v334, 0
  %1924 = vmatprep.subr.mxu0 0.0
  %1925 = vmatpush1.msra.mxu0 %v329
  %1926 = vmatprep.subr.mxu0 0.0
  %1927 = vmatpush1.msra.mxu0 %v1922
  %1928 = vmatprep.subr.mxu0 0.0
  %1929 = vmatpush1.msra.mxu0 0.0
  %1930 = vmatprep.subr.mxu0 0.0
  %1931 = vmatpush1.msra.mxu0 0.0
  %1932 = vmatprep.subr.mxu0 0.0
  %1933 = vmatpush1.msra.mxu0 0.0
  %1934 = vmatprep.subr.mxu0 0.0
  %1935 = vmatpush1.msra.mxu0 0.0
  %1936 = vmatprep.subr.mxu0 0.0
  %1937 = vmatpush1.msra.mxu0 0.0
  %1938 = vmatprep.subr.mxu0 0.0
  %1939 = vmatpush1.msra.mxu0 0.0
  %1940 = vmatprep.subr.mxu0 0.0
  %1941 = vmatpush1.msra.mxu0 0.0
  %1942 = vmatprep.subr.mxu0 0.0
  %1943 = vmatpush1.msra.mxu0 0.0
  %1944 = vmatprep.subr.mxu0 0.0
  %1945 = vmatpush1.msra.mxu0 0.0
  %1946 = vmatprep.subr.mxu0 0.0
  %1947 = vmatpush1.msra.mxu0 0.0
  %1948 = vmatprep.subr.mxu0 0.0
  %1949 = vmatpush1.msra.mxu0 0.0
  %1950 = vmatprep.subr.mxu0 0.0
  %1951 = vmatpush1.msra.mxu0 0.0
  %1952 = vmatprep.subr.mxu0 0.0
  %1953 = vmatpush1.msra.mxu0 0.0
  %1954 = vmatprep.subr.mxu0 0.0
  %1955 = vmatpush1.msra.mxu0 0.0
  %1956 = vmatprep.subr.mxu0 0.0
  %1957 = vmatpush1.msra.mxu0 0.0
  %1958 = vmatprep.subr.mxu0 0.0
  %1959 = vmatpush1.msra.mxu0 0.0
  %1960 = vmatprep.subr.mxu0 0.0
  %1961 = vmatpush1.msra.mxu0 0.0
  %1962 = vmatprep.subr.mxu0 0.0
  %1963 = vmatpush1.msra.mxu0 0.0
  %1964 = vmatprep.subr.mxu0 0.0
  %1965 = vmatpush1.msra.mxu0 0.0
  %1966 = vmatprep.subr.mxu0 0.0
  %1967 = vmatpush1.msra.mxu0 0.0
  %1968 = vmatprep.subr.mxu0 0.0
  %1969 = vmatpush1.msra.mxu0 0.0
  %1970 = vmatprep.subr.mxu0 0.0
  %1971 = vmatpush1.msra.mxu0 0.0
  %1972 = vmatprep.subr.mxu0 0.0
  %1973 = vmatpush1.msra.mxu0 0.0
  %1974 = vmatprep.subr.mxu0 0.0
  %1975 = vmatpush1.msra.mxu0 0.0
  %1976 = vmatprep.subr.mxu0 0.0
  %1977 = vmatpush1.msra.mxu0 0.0
  %1978 = vmatprep.subr.mxu0 0.0
  %1979 = vmatpush1.msra.mxu0 0.0
  %1980 = vmatprep.subr.mxu0 0.0
  %1981 = vmatpush1.msra.mxu0 0.0
  %1982 = vmatprep.subr.mxu0 0.0
  %1983 = vmatpush1.msra.mxu0 0.0
  %1984 = vmatprep.subr.mxu0 0.0
  %1985 = vmatpush1.msra.mxu0 0.0
  %1986 = vmatprep.subr.mxu0 0.0
  %1987 = vmatpush1.msra.mxu0 0.0
  %1988 = vmatprep.mubr.f32.mxu0 0.0
  %1989 = vmatmul.mubr.f32.gmra.mrb[0].mxu0 %v1920
  %v1990 = vpop.f32.mrb[0].mxu0
  %v1991 = vadd.f32 0.0, %v1990
  %v1992 = vpop.f32.mrb[0].mxu0
  %1993 = vdwg.mxu0
  %v1995 = vsel %vm1842, %v1836, 0
  %v1997 = vsel %vm1846, %v415, 0
  %1999 = vmatprep.subr.mxu0 0.0
  %2000 = vmatpush1.msra.mxu0 %v410
  %2001 = vmatprep.subr.mxu0 0.0
  %2002 = vmatpush1.msra.mxu0 %v1997
  %2003 = vmatprep.subr.mxu0 0.0
  %2004 = vmatpush1.msra.mxu0 0.0
  %2005 = vmatprep.subr.mxu0 0.0
  %2006 = vmatpush1.msra.mxu0 0.0
  %2007 = vmatprep.subr.mxu0 0.0
  %2008 = vmatpush1.msra.mxu0 0.0
  %2009 = vmatprep.subr.mxu0 0.0
  %2010 = vmatpush1.msra.mxu0 0.0
  %2011 = vmatprep.subr.mxu0 0.0
  %2012 = vmatpush1.msra.mxu0 0.0
  %2013 = vmatprep.subr.mxu0 0.0
  %2014 = vmatpush1.msra.mxu0 0.0
  %2015 = vmatprep.subr.mxu0 0.0
  %2016 = vmatpush1.msra.mxu0 0.0
  %2017 = vmatprep.subr.mxu0 0.0
  %2018 = vmatpush1.msra.mxu0 0.0
  %2019 = vmatprep.subr.mxu0 0.0
  %2020 = vmatpush1.msra.mxu0 0.0
  %2021 = vmatprep.subr.mxu0 0.0
  %2022 = vmatpush1.msra.mxu0 0.0
  %2023 = vmatprep.subr.mxu0 0.0
  %2024 = vmatpush1.msra.mxu0 0.0
  %2025 = vmatprep.subr.mxu0 0.0
  %2026 = vmatpush1.msra.mxu0 0.0
  %2027 = vmatprep.subr.mxu0 0.0
  %2028 = vmatpush1.msra.mxu0 0.0
  %2029 = vmatprep.subr.mxu0 0.0
  %2030 = vmatpush1.msra.mxu0 0.0
  %2031 = vmatprep.subr.mxu0 0.0
  %2032 = vmatpush1.msra.mxu0 0.0
  %2033 = vmatprep.subr.mxu0 0.0
  %2034 = vmatpush1.msra.mxu0 0.0
  %2035 = vmatprep.subr.mxu0 0.0
  %2036 = vmatpush1.msra.mxu0 0.0
  %2037 = vmatprep.subr.mxu0 0.0
  %2038 = vmatpush1.msra.mxu0 0.0
  %2039 = vmatprep.subr.mxu0 0.0
  %2040 = vmatpush1.msra.mxu0 0.0
  %2041 = vmatprep.subr.mxu0 0.0
  %2042 = vmatpush1.msra.mxu0 0.0
  %2043 = vmatprep.subr.mxu0 0.0
  %2044 = vmatpush1.msra.mxu0 0.0
  %2045 = vmatprep.subr.mxu0 0.0
  %2046 = vmatpush1.msra.mxu0 0.0
  %2047 = vmatprep.subr.mxu0 0.0
  %2048 = vmatpush1.msra.mxu0 0.0
  %2049 = vmatprep.subr.mxu0 0.0
  %2050 = vmatpush1.msra.mxu0 0.0
  %2051 = vmatprep.subr.mxu0 0.0
  %2052 = vmatpush1.msra.mxu0 0.0
  %2053 = vmatprep.subr.mxu0 0.0
  %2054 = vmatpush1.msra.mxu0 0.0
  %2055 = vmatprep.subr.mxu0 0.0
  %2056 = vmatpush1.msra.mxu0 0.0
  %2057 = vmatprep.subr.mxu0 0.0
  %2058 = vmatpush1.msra.mxu0 0.0
  %2059 = vmatprep.subr.mxu0 0.0
  %2060 = vmatpush1.msra.mxu0 0.0
  %2061 = vmatprep.subr.mxu0 0.0
  %2062 = vmatpush1.msra.mxu0 0.0
  %2063 = vmatprep.mubr.f32.mxu0 0.0
  %2064 = vmatmul.mubr.f32.gmra.mrb[0].mxu0 %v1995
  %v2065 = vpop.f32.mrb[0].mxu0
  %v2066 = vadd.f32 0.0, %v2065
  %v2067 = vpop.f32.mrb[0].mxu0
  %2068 = vdwg.mxu0
  %v2070 = vsel %vm1842, %v1837, 0
  %v2072 = vsel %vm1846, %v496, 0
  %2074 = vmatprep.subr.mxu0 0.0
  %2075 = vmatpush1.msra.mxu0 %v491
  %2076 = vmatprep.subr.mxu0 0.0
  %2077 = vmatpush1.msra.mxu0 %v2072
  %2078 = vmatprep.subr.mxu0 0.0
  %2079 = vmatpush1.msra.mxu0 0.0
  %2080 = vmatprep.subr.mxu0 0.0
  %2081 = vmatpush1.msra.mxu0 0.0
  %2082 = vmatprep.subr.mxu0 0.0
  %2083 = vmatpush1.msra.mxu0 0.0
  %2084 = vmatprep.subr.mxu0 0.0
  %2085 = vmatpush1.msra.mxu0 0.0
  %2086 = vmatprep.subr.mxu0 0.0
  %2087 = vmatpush1.msra.mxu0 0.0
  %2088 = vmatprep.subr.mxu0 0.0
  %2089 = vmatpush1.msra.mxu0 0.0
  %2090 = vmatprep.subr.mxu0 0.0
  %2091 = vmatpush1.msra.mxu0 0.0
  %2092 = vmatprep.subr.mxu0 0.0
  %2093 = vmatpush1.msra.mxu0 0.0
  %2094 = vmatprep.subr.mxu0 0.0
  %2095 = vmatpush1.msra.mxu0 0.0
  %2096 = vmatprep.subr.mxu0 0.0
  %2097 = vmatpush1.msra.mxu0 0.0
  %2098 = vmatprep.subr.mxu0 0.0
  %2099 = vmatpush1.msra.mxu0 0.0
  %2100 = vmatprep.subr.mxu0 0.0
  %2101 = vmatpush1.msra.mxu0 0.0
  %2102 = vmatprep.subr.mxu0 0.0
  %2103 = vmatpush1.msra.mxu0 0.0
  %2104 = vmatprep.subr.mxu0 0.0
  %2105 = vmatpush1.msra.mxu0 0.0
  %2106 = vmatprep.subr.mxu0 0.0
  %2107 = vmatpush1.msra.mxu0 0.0
  %2108 = vmatprep.subr.mxu0 0.0
  %2109 = vmatpush1.msra.mxu0 0.0
  %2110 = vmatprep.subr.mxu0 0.0
  %2111 = vmatpush1.msra.mxu0 0.0
  %2112 = vmatprep.subr.mxu0 0.0
  %2113 = vmatpush1.msra.mxu0 0.0
  %2114 = vmatprep.subr.mxu0 0.0
  %2115 = vmatpush1.msra.mxu0 0.0
  %2116 = vmatprep.subr.mxu0 0.0
  %2117 = vmatpush1.msra.mxu0 0.0
  %2118 = vmatprep.subr.mxu0 0.0
  %2119 = vmatpush1.msra.mxu0 0.0
  %2120 = vmatprep.subr.mxu0 0.0
  %2121 = vmatpush1.msra.mxu0 0.0
  %2122 = vmatprep.subr.mxu0 0.0
  %2123 = vmatpush1.msra.mxu0 0.0
  %2124 = vmatprep.subr.mxu0 0.0
  %2125 = vmatpush1.msra.mxu0 0.0
  %2126 = vmatprep.subr.mxu0 0.0
  %2127 = vmatpush1.msra.mxu0 0.0
  %2128 = vmatprep.subr.mxu0 0.0
  %2129 = vmatpush1.msra.mxu0 0.0
  %2130 = vmatprep.subr.mxu0 0.0
  %2131 = vmatpush1.msra.mxu0 0.0
  %2132 = vmatprep.subr.mxu0 0.0
  %2133 = vmatpush1.msra.mxu0 0.0
  %2134 = vmatprep.subr.mxu0 0.0
  %2135 = vmatpush1.msra.mxu0 0.0
  %2136 = vmatprep.subr.mxu0 0.0
  %2137 = vmatpush1.msra.mxu0 0.0
  %2138 = vmatprep.mubr.f32.mxu0 0.0
  %2139 = vmatmul.mubr.f32.gmra.mrb[0].mxu0 %v2070
  %v2140 = vpop.f32.mrb[0].mxu0
  %v2141 = vadd.f32 0.0, %v2140
  %v2142 = vpop.f32.mrb[0].mxu0
  %2143 = vdwg.mxu0
  %v2145 = vsel %vm1842, %v1838, 0
  %v2147 = vsel %vm1846, %v577, 0
  %2149 = vmatprep.subr.mxu0 0.0
  %2150 = vmatpush1.msra.mxu0 %v572
  %2151 = vmatprep.subr.mxu0 0.0
  %2152 = vmatpush1.msra.mxu0 %v2147
  %2153 = vmatprep.subr.mxu0 0.0
  %2154 = vmatpush1.msra.mxu0 0.0
  %2155 = vmatprep.subr.mxu0 0.0
  %2156 = vmatpush1.msra.mxu0 0.0
  %2157 = vmatprep.subr.mxu0 0.0
  %2158 = vmatpush1.msra.mxu0 0.0
  %2159 = vmatprep.subr.mxu0 0.0
  %2160 = vmatpush1.msra.mxu0 0.0
  %2161 = vmatprep.subr.mxu0 0.0
  %2162 = vmatpush1.msra.mxu0 0.0
  %2163 = vmatprep.subr.mxu0 0.0
  %2164 = vmatpush1.msra.mxu0 0.0
  %2165 = vmatprep.subr.mxu0 0.0
  %2166 = vmatpush1.msra.mxu0 0.0
  %2167 = vmatprep.subr.mxu0 0.0
  %2168 = vmatpush1.msra.mxu0 0.0
  %2169 = vmatprep.subr.mxu0 0.0
  %2170 = vmatpush1.msra.mxu0 0.0
  %2171 = vmatprep.subr.mxu0 0.0
  %2172 = vmatpush1.msra.mxu0 0.0
  %2173 = vmatprep.subr.mxu0 0.0
  %2174 = vmatpush1.msra.mxu0 0.0
  %2175 = vmatprep.subr.mxu0 0.0
  %2176 = vmatpush1.msra.mxu0 0.0
  %2177 = vmatprep.subr.mxu0 0.0
  %2178 = vmatpush1.msra.mxu0 0.0
  %2179 = vmatprep.subr.mxu0 0.0
  %2180 = vmatpush1.msra.mxu0 0.0
  %2181 = vmatprep.subr.mxu0 0.0
  %2182 = vmatpush1.msra.mxu0 0.0
  %2183 = vmatprep.subr.mxu0 0.0
  %2184 = vmatpush1.msra.mxu0 0.0
  %2185 = vmatprep.subr.mxu0 0.0
  %2186 = vmatpush1.msra.mxu0 0.0
  %2187 = vmatprep.subr.mxu0 0.0
  %2188 = vmatpush1.msra.mxu0 0.0
  %2189 = vmatprep.subr.mxu0 0.0
  %2190 = vmatpush1.msra.mxu0 0.0
  %2191 = vmatprep.subr.mxu0 0.0
  %2192 = vmatpush1.msra.mxu0 0.0
  %2193 = vmatprep.subr.mxu0 0.0
  %2194 = vmatpush1.msra.mxu0 0.0
  %2195 = vmatprep.subr.mxu0 0.0
  %2196 = vmatpush1.msra.mxu0 0.0
  %2197 = vmatprep.subr.mxu0 0.0
  %2198 = vmatpush1.msra.mxu0 0.0
  %2199 = vmatprep.subr.mxu0 0.0
  %2200 = vmatpush1.msra.mxu0 0.0
  %2201 = vmatprep.subr.mxu0 0.0
  %2202 = vmatpush1.msra.mxu0 0.0
  %2203 = vmatprep.subr.mxu0 0.0
  %2204 = vmatpush1.msra.mxu0 0.0
  %2205 = vmatprep.subr.mxu0 0.0
  %2206 = vmatpush1.msra.mxu0 0.0
  %2207 = vmatprep.subr.mxu0 0.0
  %2208 = vmatpush1.msra.mxu0 0.0
  %2209 = vmatprep.subr.mxu0 0.0
  %2210 = vmatpush1.msra.mxu0 0.0
  %2211 = vmatprep.subr.mxu0 0.0
  %2212 = vmatpush1.msra.mxu0 0.0
  %2213 = vmatprep.mubr.f32.mxu0 0.0
  %2214 = vmatmul.mubr.f32.gmra.mrb[0].mxu0 %v2145
  %v2215 = vpop.f32.mrb[0].mxu0
  %v2216 = vadd.f32 0.0, %v2215
  %v2217 = vpop.f32.mrb[0].mxu0
  %2218 = vdwg.mxu0
  %v2220 = vsel %vm1842, %v1839, 0
  %v2222 = vsel %vm1846, %v658, 0
  %2224 = vmatprep.subr.mxu0 0.0
  %2225 = vmatpush1.msra.mxu0 %v653
  %2226 = vmatprep.subr.mxu0 0.0
  %2227 = vmatpush1.msra.mxu0 %v2222
  %2228 = vmatprep.subr.mxu0 0.0
  %2229 = vmatpush1.msra.mxu0 0.0
  %2230 = vmatprep.subr.mxu0 0.0
  %2231 = vmatpush1.msra.mxu0 0.0
  %2232 = vmatprep.subr.mxu0 0.0
  %2233 = vmatpush1.msra.mxu0 0.0
  %2234 = vmatprep.subr.mxu0 0.0
  %2235 = vmatpush1.msra.mxu0 0.0
  %2236 = vmatprep.subr.mxu0 0.0
  %2237 = vmatpush1.msra.mxu0 0.0
  %2238 = vmatprep.subr.mxu0 0.0
  %2239 = vmatpush1.msra.mxu0 0.0
  %2240 = vmatprep.subr.mxu0 0.0
  %2241 = vmatpush1.msra.mxu0 0.0
  %2242 = vmatprep.subr.mxu0 0.0
  %2243 = vmatpush1.msra.mxu0 0.0
  %2244 = vmatprep.subr.mxu0 0.0
  %2245 = vmatpush1.msra.mxu0 0.0
  %2246 = vmatprep.subr.mxu0 0.0
  %2247 = vmatpush1.msra.mxu0 0.0
  %2248 = vmatprep.subr.mxu0 0.0
  %2249 = vmatpush1.msra.mxu0 0.0
  %2250 = vmatprep.subr.mxu0 0.0
  %2251 = vmatpush1.msra.mxu0 0.0
  %2252 = vmatprep.subr.mxu0 0.0
  %2253 = vmatpush1.msra.mxu0 0.0
  %2254 = vmatprep.subr.mxu0 0.0
  %2255 = vmatpush1.msra.mxu0 0.0
  %2256 = vmatprep.subr.mxu0 0.0
  %2257 = vmatpush1.msra.mxu0 0.0
  %2258 = vmatprep.subr.mxu0 0.0
  %2259 = vmatpush1.msra.mxu0 0.0
  %2260 = vmatprep.subr.mxu0 0.0
  %2261 = vmatpush1.msra.mxu0 0.0
  %2262 = vmatprep.subr.mxu0 0.0
  %2263 = vmatpush1.msra.mxu0 0.0
  %2264 = vmatprep.subr.mxu0 0.0
  %2265 = vmatpush1.msra.mxu0 0.0
  %2266 = vmatprep.subr.mxu0 0.0
  %2267 = vmatpush1.msra.mxu0 0.0
  %2268 = vmatprep.subr.mxu0 0.0
  %2269 = vmatpush1.msra.mxu0 0.0
  %2270 = vmatprep.subr.mxu0 0.0
  %2271 = vmatpush1.msra.mxu0 0.0
  %2272 = vmatprep.subr.mxu0 0.0
  %2273 = vmatpush1.msra.mxu0 0.0
  %2274 = vmatprep.subr.mxu0 0.0
  %2275 = vmatpush1.msra.mxu0 0.0
  %2276 = vmatprep.subr.mxu0 0.0
  %2277 = vmatpush1.msra.mxu0 0.0
  %2278 = vmatprep.subr.mxu0 0.0
  %2279 = vmatpush1.msra.mxu0 0.0
  %2280 = vmatprep.subr.mxu0 0.0
  %2281 = vmatpush1.msra.mxu0 0.0
  %2282 = vmatprep.subr.mxu0 0.0
  %2283 = vmatpush1.msra.mxu0 0.0
  %2284 = vmatprep.subr.mxu0 0.0
  %2285 = vmatpush1.msra.mxu0 0.0
  %2286 = vmatprep.subr.mxu0 0.0
  %2287 = vmatpush1.msra.mxu0 0.0
  %2288 = vmatprep.mubr.f32.mxu0 0.0
  %2289 = vmatmul.mubr.f32.gmra.mrb[0].mxu0 %v2220
  %v2290 = vpop.f32.mrb[0].mxu0
  %v2291 = vadd.f32 0.0, %v2290
  %v2292 = vpop.f32.mrb[0].mxu0
  %2293 = vdwg.mxu0
  %v2295 = vsel %vm1842, %v1840, 0
  %v2297 = vsel %vm1846, %v739, 0
  %2299 = vmatprep.subr.mxu0 0.0
  %2300 = vmatpush1.msra.mxu0 %v734
  %2301 = vmatprep.subr.mxu0 0.0
  %2302 = vmatpush1.msra.mxu0 %v2297
  %2303 = vmatprep.subr.mxu0 0.0
  %2304 = vmatpush1.msra.mxu0 0.0
  %2305 = vmatprep.subr.mxu0 0.0
  %2306 = vmatpush1.msra.mxu0 0.0
  %2307 = vmatprep.subr.mxu0 0.0
  %2308 = vmatpush1.msra.mxu0 0.0
  %2309 = vmatprep.subr.mxu0 0.0
  %2310 = vmatpush1.msra.mxu0 0.0
  %2311 = vmatprep.subr.mxu0 0.0
  %2312 = vmatpush1.msra.mxu0 0.0
  %2313 = vmatprep.subr.mxu0 0.0
  %2314 = vmatpush1.msra.mxu0 0.0
  %2315 = vmatprep.subr.mxu0 0.0
  %2316 = vmatpush1.msra.mxu0 0.0
  %2317 = vmatprep.subr.mxu0 0.0
  %2318 = vmatpush1.msra.mxu0 0.0
  %2319 = vmatprep.subr.mxu0 0.0
  %2320 = vmatpush1.msra.mxu0 0.0
  %2321 = vmatprep.subr.mxu0 0.0
  %2322 = vmatpush1.msra.mxu0 0.0
  %2323 = vmatprep.subr.mxu0 0.0
  %2324 = vmatpush1.msra.mxu0 0.0
  %2325 = vmatprep.subr.mxu0 0.0
  %2326 = vmatpush1.msra.mxu0 0.0
  %2327 = vmatprep.subr.mxu0 0.0
  %2328 = vmatpush1.msra.mxu0 0.0
  %2329 = vmatprep.subr.mxu0 0.0
  %2330 = vmatpush1.msra.mxu0 0.0
  %2331 = vmatprep.subr.mxu0 0.0
  %2332 = vmatpush1.msra.mxu0 0.0
  %2333 = vmatprep.subr.mxu0 0.0
  %2334 = vmatpush1.msra.mxu0 0.0
  %2335 = vmatprep.subr.mxu0 0.0
  %2336 = vmatpush1.msra.mxu0 0.0
  %2337 = vmatprep.subr.mxu0 0.0
  %2338 = vmatpush1.msra.mxu0 0.0
  %2339 = vmatprep.subr.mxu0 0.0
  %2340 = vmatpush1.msra.mxu0 0.0
  %2341 = vmatprep.subr.mxu0 0.0
  %2342 = vmatpush1.msra.mxu0 0.0
  %2343 = vmatprep.subr.mxu0 0.0
  %2344 = vmatpush1.msra.mxu0 0.0
  %2345 = vmatprep.subr.mxu0 0.0
  %2346 = vmatpush1.msra.mxu0 0.0
  %2347 = vmatprep.subr.mxu0 0.0
  %2348 = vmatpush1.msra.mxu0 0.0
  %2349 = vmatprep.subr.mxu0 0.0
  %2350 = vmatpush1.msra.mxu0 0.0
  %2351 = vmatprep.subr.mxu0 0.0
  %2352 = vmatpush1.msra.mxu0 0.0
  %2353 = vmatprep.subr.mxu0 0.0
  %2354 = vmatpush1.msra.mxu0 0.0
  %2355 = vmatprep.subr.mxu0 0.0
  %2356 = vmatpush1.msra.mxu0 0.0
  %2357 = vmatprep.subr.mxu0 0.0
  %2358 = vmatpush1.msra.mxu0 0.0
  %2359 = vmatprep.subr.mxu0 0.0
  %2360 = vmatpush1.msra.mxu0 0.0
  %2361 = vmatprep.subr.mxu0 0.0
  %2362 = vmatpush1.msra.mxu0 0.0
  %2363 = vmatprep.mubr.f32.mxu0 0.0
  %2364 = vmatmul.mubr.f32.gmra.mrb[0].mxu0 %v2295
  %v2365 = vpop.f32.mrb[0].mxu0
  %v2366 = vadd.f32 0.0, %v2365
  %v2367 = vpop.f32.mrb[0].mxu0
  %2368 = vdwg.mxu0
  %v2370 = vsel %vm1842, %v1841, 0
  %v2372 = vsel %vm1846, %v820, 0
  %2374 = vmatprep.subr.mxu0 0.0
  %2375 = vmatpush1.msra.mxu0 %v815
  %2376 = vmatprep.subr.mxu0 0.0
  %2377 = vmatpush1.msra.mxu0 %v2372
  %2378 = vmatprep.subr.mxu0 0.0
  %2379 = vmatpush1.msra.mxu0 0.0
  %2380 = vmatprep.subr.mxu0 0.0
  %2381 = vmatpush1.msra.mxu0 0.0
  %2382 = vmatprep.subr.mxu0 0.0
  %2383 = vmatpush1.msra.mxu0 0.0
  %2384 = vmatprep.subr.mxu0 0.0
  %2385 = vmatpush1.msra.mxu0 0.0
  %2386 = vmatprep.subr.mxu0 0.0
  %2387 = vmatpush1.msra.mxu0 0.0
  %2388 = vmatprep.subr.mxu0 0.0
  %2389 = vmatpush1.msra.mxu0 0.0
  %2390 = vmatprep.subr.mxu0 0.0
  %2391 = vmatpush1.msra.mxu0 0.0
  %2392 = vmatprep.subr.mxu0 0.0
  %2393 = vmatpush1.msra.mxu0 0.0
  %2394 = vmatprep.subr.mxu0 0.0
  %2395 = vmatpush1.msra.mxu0 0.0
  %2396 = vmatprep.subr.mxu0 0.0
  %2397 = vmatpush1.msra.mxu0 0.0
  %2398 = vmatprep.subr.mxu0 0.0
  %2399 = vmatpush1.msra.mxu0 0.0
  %2400 = vmatprep.subr.mxu0 0.0
  %2401 = vmatpush1.msra.mxu0 0.0
  %2402 = vmatprep.subr.mxu0 0.0
  %2403 = vmatpush1.msra.mxu0 0.0
  %2404 = vmatprep.subr.mxu0 0.0
  %2405 = vmatpush1.msra.mxu0 0.0
  %2406 = vmatprep.subr.mxu0 0.0
  %2407 = vmatpush1.msra.mxu0 0.0
  %2408 = vmatprep.subr.mxu0 0.0
  %2409 = vmatpush1.msra.mxu0 0.0
  %2410 = vmatprep.subr.mxu0 0.0
  %2411 = vmatpush1.msra.mxu0 0.0
  %2412 = vmatprep.subr.mxu0 0.0
  %2413 = vmatpush1.msra.mxu0 0.0
  %2414 = vmatprep.subr.mxu0 0.0
  %2415 = vmatpush1.msra.mxu0 0.0
  %2416 = vmatprep.subr.mxu0 0.0
  %2417 = vmatpush1.msra.mxu0 0.0
  %2418 = vmatprep.subr.mxu0 0.0
  %2419 = vmatpush1.msra.mxu0 0.0
  %2420 = vmatprep.subr.mxu0 0.0
  %2421 = vmatpush1.msra.mxu0 0.0
  %2422 = vmatprep.subr.mxu0 0.0
  %2423 = vmatpush1.msra.mxu0 0.0
  %2424 = vmatprep.subr.mxu0 0.0
  %2425 = vmatpush1.msra.mxu0 0.0
  %2426 = vmatprep.subr.mxu0 0.0
  %2427 = vmatpush1.msra.mxu0 0.0
  %2428 = vmatprep.subr.mxu0 0.0
  %2429 = vmatpush1.msra.mxu0 0.0
  %2430 = vmatprep.subr.mxu0 0.0
  %2431 = vmatpush1.msra.mxu0 0.0
  %2432 = vmatprep.subr.mxu0 0.0
  %2433 = vmatpush1.msra.mxu0 0.0
  %2434 = vmatprep.subr.mxu0 0.0
  %2435 = vmatpush1.msra.mxu0 0.0
  %2436 = vmatprep.subr.mxu0 0.0
  %2437 = vmatpush1.msra.mxu0 0.0
  %2438 = vmatprep.mubr.f32.mxu0 0.0
  %2439 = vmatmul.mubr.f32.gmra.mrb[0].mxu0 %v2370
  %v2440 = vpop.f32.mrb[0].mxu0
  %v2441 = vadd.f32 0.0, %v2440
  %v2442 = vpop.f32.mrb[0].mxu0
  %2443 = vdwg.mxu0
  %v2452 = vrot.slane %v1991, 7
  %vm2453 = vcmask 1041409
  %v2454 = vsel %vm2453, %v2452, %v1916
  %v2455 = vrot.slane %v2066, 6
  %vm2456 = vcmask 1042434
  %v2457 = vsel %vm2456, %v2455, %v2454
  %v2458 = vrot.slane %v2141, 5
  %vm2459 = vcmask 1043459
  %v2460 = vsel %vm2459, %v2458, %v2457
  %v2461 = vrot.slane %v2216, 4
  %vm2462 = vcmask 1044484
  %v2463 = vsel %vm2462, %v2461, %v2460
  %v2464 = vrot.slane %v2291, 3
  %vm2465 = vcmask 1045509
  %v2466 = vsel %vm2465, %v2464, %v2463
  %v2467 = vrot.slane %v2366, 2
  %vm2468 = vcmask 1046534
  %v2469 = vsel %vm2468, %v2467, %v2466
  %v2470 = vrot.slane %v2441, 1
  %vm2471 = vcmask 1047559
  %v2472 = vsel %vm2471, %v2470, %v2469
  %v2474 = vrot.slane %v1916, 1
  %v2475 = vsel %vm2453, %v1991, %v2474
  %v2476 = vrot.slane %v2066, 7
  %v2477 = vsel %vm2456, %v2476, %v2475
  %v2478 = vrot.slane %v2141, 6
  %v2479 = vsel %vm2459, %v2478, %v2477
  %v2480 = vrot.slane %v2216, 5
  %v2481 = vsel %vm2462, %v2480, %v2479
  %v2482 = vrot.slane %v2291, 4
  %v2483 = vsel %vm2465, %v2482, %v2481
  %v2484 = vrot.slane %v2366, 3
  %v2485 = vsel %vm2468, %v2484, %v2483
  %v2486 = vrot.slane %v2441, 2
  %v2487 = vsel %vm2471, %v2486, %v2485
  %2488 = vrot.lane.b32.xlu0 %v2487, 32
  %v2489 = vpop.permute.xlu0 %2488
  %v2491 = vsel %vm872, %v2472, %v2489
  %vm2492 = vcmask 523264
  %2493 = vst.msk [vmem:[%s4] sm:$0xff] %vm2492, %v2491
  // Predicated region
  $region18: #{stack_buffer_query_configuration_encoder.1} parent=0 // pred_check
    _
  $region19: #{stack_buffer_query_configuration_encoder.1} parent=0 // pred_check_branch
    %2495 = sbr.rel (0) target = $region21
  $region20: #{stack_buffer_query_configuration_encoder.1} parent=0 // pred_region
    _
  $region21: #{stack_buffer_query_configuration_encoder.1} parent=0 // pred_fallthru
    _
  // Predicated region
  $region22: #{stack_buffer_query_configuration_encoder.1} parent=0 // pred_check
    _
  $region23: #{stack_buffer_query_configuration_encoder.1} parent=0 // pred_check_branch
    %2497 = sbr.rel (0) target = $region25
  $region24: #{stack_buffer_query_configuration_encoder.1} parent=0 // pred_region
    _
  $region25: #{stack_buffer_query_configuration_encoder.1} parent=0 // pred_fallthru
    _

</llo_original>
